<compile_context>
chip_gen: v7x
topology: tpu7x:2x2x1
jax: 0.10.0
libtpu: 0.0.40
codegen_flags: <defaults>
</compile_context>

<pallas_src>
import jax
import jax.numpy as jnp
from jax.experimental import pallas as pl
from jax.experimental.pallas import tpu as pltpu

N_NODES   = 16
IN_FEATS  = 72        # withSuspectValue = False  -> GATConv(72, 32, num_heads)
GAT_OUT   = 32
NUM_HEADS = 2
HD        = NUM_HEADS * GAT_OUT   # 64
EPS       = 1e-5


# ---------------- packed-parameter layout (rows of a [P_ROWS, 64] f32 buffer) ----
def _align8(r):
    return (r + 7) // 8 * 8

ROW_WG   = 0                              # [72, 64]  GAT shared projection
ROW_ATTN = _align8(ROW_WG + IN_FEATS)     # [64, 2H]  attention selector matrix
ROW_W1   = _align8(ROW_ATTN + HD)         # [64, 32]  fc1
ROW_W2T  = _align8(ROW_W1 + HD)           # [ 8, 32]  fc2 weight, transposed
ROW_W3T  = _align8(ROW_W2T + 8)           # [ 4,  8]  fc3 weight, transposed
ROW_W4T  = _align8(ROW_W3T + 4)           # [ 2,  4]  fc4 weight, transposed
ROW_VEC  = _align8(ROW_W4T + 2)           # 15 vector rows (biases + BN gamma/beta)
N_VEC    = 15
P_ROWS   = _align8(ROW_VEC + N_VEC)
P_COLS   = HD                             # 64


def _leaky(v, slope):
    return jnp.where(v >= 0, v, slope * v)


def _batchnorm(v, gamma, beta):
    # nn.BatchNorm1d training-mode forward: batch mean / biased variance.
    # TODO(synk): eval-mode running_mean/running_var parity not implemented.
    mu = jnp.mean(v, axis=0, keepdims=True)
    var = jnp.mean((v - mu) ** 2, axis=0, keepdims=True)
    return (v - mu) * jax.lax.rsqrt(var + EPS) * gamma + beta


def _fc_small(h, w_t, b):
    # Tiny fc (N_out <= 8): keep it off the MXU.  One VPU multiply + XLU lane
    # reduce per output column; avoids serialized MXU push/drain round-trips.
    cols = [jnp.sum(h * w_t[n:n + 1, :], axis=1, keepdims=True)
            for n in range(w_t.shape[0])]
    return jnp.concatenate(cols, axis=1) + b


def net_kernel(x_ref, adj_ref, p_ref, out_ref):
    x = x_ref[...]                 # [N, F]
    adj = adj_ref[...]             # [N, N]  (dst, src)

    # ---- carve the packed parameter buffer (static slices: free) ----
    wg   = p_ref[ROW_WG:ROW_WG + IN_FEATS, :]                    # [72, 64]
    attn = p_ref[ROW_ATTN:ROW_ATTN + HD, 0:2 * NUM_HEADS]        # [64, 2H]
    w1   = p_ref[ROW_W1:ROW_W1 + HD, 0:32]                       # [64, 32]
    w2t  = p_ref[ROW_W2T:ROW_W2T + 8, 0:32]                      # [ 8, 32]
    w3t  = p_ref[ROW_W3T:ROW_W3T + 4, 0:8]                       # [ 4,  8]
    w4t  = p_ref[ROW_W4T:ROW_W4T + 2, 0:4]                       # [ 2,  4]

    def vec(i, width):
        return p_ref[ROW_VEC + i:ROW_VEC + i + 1, 0:width]       # [1, width]

    bg = vec(0, HD)
    b1, b2, b3, b4 = vec(1, 32), vec(2, 8), vec(3, 4), vec(4, 2)
    g1, be1 = vec(5, HD), vec(6, HD)
    g2, be2 = vec(7, 32), vec(8, 32)
    g3, be3 = vec(9, 8),  vec(10, 8)
    g4, be4 = vec(11, 4), vec(12, 4)
    g5, be5 = vec(13, 2), vec(14, 2)

    # ---- GATConv: both heads fused ----
    feat = jnp.dot(x, wg, preferred_element_type=jnp.float32)        # [N, H*D]  MXU
    # One small MXU matmul replaces 4 XLU lane reduces:
    #   scores[:, h]   = el_h = sum_d feat[:, h*D+d] * attn_l[h, d]
    #   scores[:, H+h] = er_h = sum_d feat[:, h*D+d] * attn_r[h, d]
    scores = jnp.dot(feat, attn, preferred_element_type=jnp.float32)  # [N, 2H]
    el = scores[:, 0:NUM_HEADS]                                       # [N, H]
    er = scores[:, NUM_HEADS:2 * NUM_HEADS]                           # [N, H]
    elT = jnp.transpose(el)                                           # [H, N] (one transpose)

    # e_h[i, j] = er[i, h] + el[j, h]  (dst i, src j)
    e3 = jnp.stack([er[:, h:h + 1] + elT[h:h + 1, :]
                    for h in range(NUM_HEADS)], axis=0)               # [H, N, N]
    e3 = _leaky(e3, 0.2)                                              # negative_slope=0.2
    e3 = jnp.where(adj[None, :, :] > 0, e3, -1e9)                     # mask non-edges
    m = jnp.max(e3, axis=-1, keepdims=True)                           # one masked softmax
    p = jnp.exp(e3 - m)
    alpha = p * pl.reciprocal(jnp.sum(p, axis=-1, keepdims=True), approx=True)

    fh3 = jnp.stack([feat[:, h * GAT_OUT:(h + 1) * GAT_OUT]
                     for h in range(NUM_HEADS)], axis=0)              # [H, N, D]
    rst3 = jnp.einsum('hij,hjd->hid', alpha, fh3,
                      preferred_element_type=jnp.float32)             # one batched MXU matmul
    hid = jnp.concatenate([rst3[h] for h in range(NUM_HEADS)], axis=1) + bg   # [N, H*D]

    # ---- x.view(-1, 32*H) -> BN -> LeakyReLU(0.1) -> fc chain ----
    hid = _leaky(_batchnorm(hid, g1, be1), 0.1)
    hid = jnp.dot(hid, w1, preferred_element_type=jnp.float32) + b1   # fc1 on MXU
    hid = _leaky(_batchnorm(hid, g2, be2), 0.1)
    hid = _fc_small(hid, w2t, b2)                                     # fc2 off MXU
    hid = _leaky(_batchnorm(hid, g3, be3), 0.1)
    hid = _fc_small(hid, w3t, b3)                                     # fc3 off MXU
    hid = _leaky(_batchnorm(hid, g4, be4), 0.1)
    hid = _fc_small(hid, w4t, b4)                                     # fc4 off MXU
    hid = _leaky(_batchnorm(hid, g5, be5), 0.1)

    # Softmax(dim=1) -- exact divide so output rows sum to 1 tightly.
    mx = jnp.max(hid, axis=1, keepdims=True)
    ex = jnp.exp(hid - mx)
    out_ref[...] = ex / jnp.sum(ex, axis=1, keepdims=True)


def net_forward(x, adj, packed_params):
    """x: [B, N, F], adj: [B, N, N], packed_params: [P_ROWS, P_COLS] -> [B, N, 2]."""
    B, N, F = x.shape
    return pl.pallas_call(
        net_kernel,
        out_shape=jax.ShapeDtypeStruct((B, N, 2), jnp.float32),
        grid=(B,),
        in_specs=[
            pl.BlockSpec((None, N, F), lambda b: (b, 0, 0)),
            pl.BlockSpec((None, N, N), lambda b: (b, 0, 0)),
            # Parameters: single DMA, VMEM-resident across the whole batch grid.
            pl.BlockSpec((P_ROWS, P_COLS), lambda b: (0, 0)),
        ],
        out_specs=pl.BlockSpec((None, N, 2), lambda b: (b, 0, 0)),
        compiler_params=pltpu.CompilerParams(
            dimension_semantics=("parallel",)),
    )(x, adj, packed_params)


def make_params(key):
    def nrm(k, shape, scale=0.1):
        return scale * jax.random.normal(k, shape, dtype=jnp.float32)

    ks = jax.random.split(key, 16)
    params = (
        nrm(ks[0], (IN_FEATS, HD)),          # GAT fc weight        [F, H*D]
        nrm(ks[1], (1, HD)),                 # GAT bias             [1, H*D]
        nrm(ks[2], (NUM_HEADS, GAT_OUT)),    # attn_l               [H, D]
        nrm(ks[3], (NUM_HEADS, GAT_OUT)),    # attn_r               [H, D]
        nrm(ks[4], (HD, 32)), nrm(ks[5], (1, 32)),   # fc1
        nrm(ks[6], (32, 8)),  nrm(ks[7], (1, 8)),    # fc2
        nrm(ks[8], (8, 4)),   nrm(ks[9], (1, 4)),    # fc3
        nrm(ks[10], (4, 2)),  nrm(ks[11], (1, 2)),   # fc4
        # BatchNorm affine params (gamma, beta) for 5 BN layers
        jnp.ones((1, HD), jnp.float32),  jnp.zeros((1, HD), jnp.float32),
        jnp.ones((1, 32), jnp.float32),  jnp.zeros((1, 32), jnp.float32),
        jnp.ones((1, 8),  jnp.float32),  jnp.zeros((1, 8),  jnp.float32),
        jnp.ones((1, 4),  jnp.float32),  jnp.zeros((1, 4),  jnp.float32),
        jnp.ones((1, 2),  jnp.float32),  jnp.zeros((1, 2),  jnp.float32),
    )
    return params


def pack_params(params):
    """Pack all parameters into one [P_ROWS, P_COLS] f32 buffer (single DMA)."""
    (wg, bg, al, ar, w1, b1, w2, b2, w3, b3, w4, b4,
     g1, be1, g2, be2, g3, be3, g4, be4, g5, be5) = params

    # Attention selector matrix so that feat @ attn = [el_0..el_{H-1}, er_0..er_{H-1}].
    attn = jnp.zeros((HD, 2 * NUM_HEADS), jnp.float32)
    for h in range(NUM_HEADS):
        attn = attn.at[h * GAT_OUT:(h + 1) * GAT_OUT, h].set(al[h])
        attn = attn.at[h * GAT_OUT:(h + 1) * GAT_OUT, NUM_HEADS + h].set(ar[h])

    buf = jnp.zeros((P_ROWS, P_COLS), jnp.float32)

    def put(buf, row, block):
        r, c = block.shape
        return buf.at[row:row + r, 0:c].set(block)

    buf = put(buf, ROW_WG, wg)
    buf = put(buf, ROW_ATTN, attn)
    buf = put(buf, ROW_W1, w1)
    buf = put(buf, ROW_W2T, w2.T)
    buf = put(buf, ROW_W3T, w3.T)
    buf = put(buf, ROW_W4T, w4.T)
    vec_params = [bg, b1, b2, b3, b4, g1, be1, g2, be2, g3, be3, g4, be4, g5, be5]
    for i, v in enumerate(vec_params):
        buf = put(buf, ROW_VEC + i, v.reshape(1, -1))
    return buf


if __name__ == "__main__":
    key = jax.random.PRNGKey(0)
    kx, kadj, kp = jax.random.split(key, 3)

    B = 4   # batch of graphs processed in one pallas_call (grid=(B,))
    x = jax.random.normal(kx, (B, N_NODES, IN_FEATS), dtype=jnp.float32)
    # random sparse-ish adjacency with guaranteed self-loops
    adj = (jax.random.uniform(kadj, (B, N_NODES, N_NODES)) < 0.3).astype(jnp.float32)
    adj = jnp.maximum(adj, jnp.eye(N_NODES, dtype=jnp.float32)[None])

    params = make_params(kp)
    packed = pack_params(params)

    out = jax.jit(net_forward)(x, adj, packed)
    out = jax.block_until_ready(out)

    assert out.shape == (B, N_NODES, 2)
    assert bool(jnp.all(jnp.isfinite(out)))
    # rows of Softmax(dim=1) output should sum to 1
    assert bool(jnp.allclose(jnp.sum(out, axis=-1), 1.0, atol=1e-5))
    print("KERNEL_OK")
</pallas_src>

<mosaic_0001>
module attributes {stable_mosaic.version = 11 : i64} {
  func.func @net_kernel(%arg0: i32, %arg1: memref<1x16x72xf32, #tpu.memory_space<vmem>>, %arg2: memref<1x16x16xf32, #tpu.memory_space<vmem>>, %arg3: memref<240x64xf32, #tpu.memory_space<vmem>>, %arg4: memref<1x16x2xf32, #tpu.memory_space<vmem>>) attributes {dimension_semantics = [#tpu.dimension_semantics<parallel>], iteration_bounds = array<i64: 4>, scalar_prefetch = 0 : i64, scratch_operands = 0 : i64, tpu.core_type = #tpu.core_type<tc>, window_params = [{transform_indices = @transform_0, window_bounds = array<i64: 1, 16, 72>}, {transform_indices = @transform_1, window_bounds = array<i64: 1, 16, 16>}, {pipeline_mode = #tpu.pipeline_mode<synchronous>, transform_indices = @transform_2, window_bounds = array<i64: 240, 64>}, {transform_indices = @transform_3, window_bounds = array<i64: 1, 16, 2>}]} {
    %c0 = arith.constant 0 : index
    %c0_0 = arith.constant 0 : index
    %c0_1 = arith.constant 0 : index
    %0 = vector.load %arg1[%c0, %c0_0, %c0_1] : memref<1x16x72xf32, #tpu.memory_space<vmem>>, vector<1x16x72xf32>
    %1 = vector.shape_cast %0 : vector<1x16x72xf32> to vector<16x72xf32>
    %c0_2 = arith.constant 0 : index
    %c0_3 = arith.constant 0 : index
    %c0_4 = arith.constant 0 : index
    %2 = vector.load %arg2[%c0_2, %c0_3, %c0_4] : memref<1x16x16xf32, #tpu.memory_space<vmem>>, vector<1x16x16xf32>
    %3 = vector.shape_cast %2 : vector<1x16x16xf32> to vector<16x16xf32>
    %c0_5 = arith.constant 0 : index
    %c0_6 = arith.constant 0 : index
    %4 = vector.load %arg3[%c0_5, %c0_6] : memref<240x64xf32, #tpu.memory_space<vmem>>, vector<72x64xf32>
    %c72 = arith.constant 72 : index
    %c0_7 = arith.constant 0 : index
    %5 = vector.load %arg3[%c72, %c0_7] : memref<240x64xf32, #tpu.memory_space<vmem>>, vector<64x4xf32>
    %c136 = arith.constant 136 : index
    %c0_8 = arith.constant 0 : index
    %6 = vector.load %arg3[%c136, %c0_8] : memref<240x64xf32, #tpu.memory_space<vmem>>, vector<64x32xf32>
    %c200 = arith.constant 200 : index
    %c0_9 = arith.constant 0 : index
    %7 = vector.load %arg3[%c200, %c0_9] : memref<240x64xf32, #tpu.memory_space<vmem>>, vector<8x32xf32>
    %c208 = arith.constant 208 : index
    %c0_10 = arith.constant 0 : index
    %8 = vector.load %arg3[%c208, %c0_10] : memref<240x64xf32, #tpu.memory_space<vmem>>, vector<4x8xf32>
    %c216 = arith.constant 216 : index
    %c0_11 = arith.constant 0 : index
    %9 = vector.load %arg3[%c216, %c0_11] : memref<240x64xf32, #tpu.memory_space<vmem>>, vector<2x4xf32>
    %c224 = arith.constant 224 : index
    %c0_12 = arith.constant 0 : index
    %10 = vector.load %arg3[%c224, %c0_12] : memref<240x64xf32, #tpu.memory_space<vmem>>, vector<1x64xf32>
    %c225 = arith.constant 225 : index
    %c0_13 = arith.constant 0 : index
    %11 = vector.load %arg3[%c225, %c0_13] : memref<240x64xf32, #tpu.memory_space<vmem>>, vector<1x32xf32>
    %c226 = arith.constant 226 : index
    %c0_14 = arith.constant 0 : index
    %12 = vector.load %arg3[%c226, %c0_14] : memref<240x64xf32, #tpu.memory_space<vmem>>, vector<1x8xf32>
    %c227 = arith.constant 227 : index
    %c0_15 = arith.constant 0 : index
    %13 = vector.load %arg3[%c227, %c0_15] : memref<240x64xf32, #tpu.memory_space<vmem>>, vector<1x4xf32>
    %c228 = arith.constant 228 : index
    %c0_16 = arith.constant 0 : index
    %14 = vector.load %arg3[%c228, %c0_16] : memref<240x64xf32, #tpu.memory_space<vmem>>, vector<1x2xf32>
    %c229 = arith.constant 229 : index
    %c0_17 = arith.constant 0 : index
    %15 = vector.load %arg3[%c229, %c0_17] : memref<240x64xf32, #tpu.memory_space<vmem>>, vector<1x64xf32>
    %c230 = arith.constant 230 : index
    %c0_18 = arith.constant 0 : index
    %16 = vector.load %arg3[%c230, %c0_18] : memref<240x64xf32, #tpu.memory_space<vmem>>, vector<1x64xf32>
    %c231 = arith.constant 231 : index
    %c0_19 = arith.constant 0 : index
    %17 = vector.load %arg3[%c231, %c0_19] : memref<240x64xf32, #tpu.memory_space<vmem>>, vector<1x32xf32>
    %c232 = arith.constant 232 : index
    %c0_20 = arith.constant 0 : index
    %18 = vector.load %arg3[%c232, %c0_20] : memref<240x64xf32, #tpu.memory_space<vmem>>, vector<1x32xf32>
    %c233 = arith.constant 233 : index
    %c0_21 = arith.constant 0 : index
    %19 = vector.load %arg3[%c233, %c0_21] : memref<240x64xf32, #tpu.memory_space<vmem>>, vector<1x8xf32>
    %c234 = arith.constant 234 : index
    %c0_22 = arith.constant 0 : index
    %20 = vector.load %arg3[%c234, %c0_22] : memref<240x64xf32, #tpu.memory_space<vmem>>, vector<1x8xf32>
    %c235 = arith.constant 235 : index
    %c0_23 = arith.constant 0 : index
    %21 = vector.load %arg3[%c235, %c0_23] : memref<240x64xf32, #tpu.memory_space<vmem>>, vector<1x4xf32>
    %c236 = arith.constant 236 : index
    %c0_24 = arith.constant 0 : index
    %22 = vector.load %arg3[%c236, %c0_24] : memref<240x64xf32, #tpu.memory_space<vmem>>, vector<1x4xf32>
    %c237 = arith.constant 237 : index
    %c0_25 = arith.constant 0 : index
    %23 = vector.load %arg3[%c237, %c0_25] : memref<240x64xf32, #tpu.memory_space<vmem>>, vector<1x2xf32>
    %c238 = arith.constant 238 : index
    %c0_26 = arith.constant 0 : index
    %24 = vector.load %arg3[%c238, %c0_26] : memref<240x64xf32, #tpu.memory_space<vmem>>, vector<1x2xf32>
    %cst = arith.constant dense<0.000000e+00> : vector<16x64xf32>
    %25 = tpu.matmul %1, %4, %cst {dimension_numbers = #tpu.dot_dimension_numbers<[1], [0], [0], [1], [0, 0, 1, 1], [], []>} : vector<16x72xf32>, vector<72x64xf32>, vector<16x64xf32> -> vector<16x64xf32>
    %cst_27 = arith.constant dense<0.000000e+00> : vector<16x4xf32>
    %26 = tpu.matmul %25, %5, %cst_27 {dimension_numbers = #tpu.dot_dimension_numbers<[1], [0], [0], [1], [0, 0, 1, 1], [], []>} : vector<16x64xf32>, vector<64x4xf32>, vector<16x4xf32> -> vector<16x4xf32>
    %27 = vector.extract_strided_slice %26 {offsets = [0, 0], sizes = [16, 2], strides = [1, 1]} : vector<16x4xf32> to vector<16x2xf32>
    %28 = vector.extract_strided_slice %26 {offsets = [0, 2], sizes = [16, 2], strides = [1, 1]} : vector<16x4xf32> to vector<16x2xf32>
    %29 = tpu.transpose %27, [1, 0] : vector<16x2xf32> -> vector<2x16xf32>
    %30 = vector.extract_strided_slice %28 {offsets = [0, 0], sizes = [16, 1], strides = [1, 1]} : vector<16x2xf32> to vector<16x1xf32>
    %31 = vector.extract_strided_slice %29 {offsets = [0, 0], sizes = [1, 16], strides = [1, 1]} : vector<2x16xf32> to vector<1x16xf32>
    %32 = vector.broadcast %30 : vector<16x1xf32> to vector<16x16xf32>
    %33 = vector.broadcast %31 : vector<1x16xf32> to vector<16x16xf32>
    %34 = arith.addf %32, %33 : vector<16x16xf32>
    %35 = vector.extract_strided_slice %28 {offsets = [0, 1], sizes = [16, 1], strides = [1, 1]} : vector<16x2xf32> to vector<16x1xf32>
    %36 = vector.extract_strided_slice %29 {offsets = [1, 0], sizes = [1, 16], strides = [1, 1]} : vector<2x16xf32> to vector<1x16xf32>
    %37 = vector.broadcast %35 : vector<16x1xf32> to vector<16x16xf32>
    %38 = vector.broadcast %36 : vector<1x16xf32> to vector<16x16xf32>
    %39 = arith.addf %37, %38 : vector<16x16xf32>
    %40 = vector.shape_cast %34 : vector<16x16xf32> to vector<1x16x16xf32>
    %41 = vector.shape_cast %39 : vector<16x16xf32> to vector<1x16x16xf32>
    %42 = tpu.concatenate %40, %41 in 0 : vector<1x16x16xf32>, vector<1x16x16xf32> -> vector<2x16x16xf32>
    %cst_28 = arith.constant 0.000000e+00 : f32
    %43 = vector.broadcast %cst_28 : f32 to vector<2x16x16xf32>
    %44 = arith.cmpf oge, %42, %43 : vector<2x16x16xf32>
    %cst_29 = arith.constant 2.000000e-01 : f32
    %45 = vector.broadcast %cst_29 : f32 to vector<2x16x16xf32>
    %46 = arith.mulf %45, %42 : vector<2x16x16xf32>
    %47 = arith.select %44, %42, %46 : vector<2x16x16xi1>, vector<2x16x16xf32>
    %48 = vector.shape_cast %3 : vector<16x16xf32> to vector<1x16x16xf32>
    %cst_30 = arith.constant 0.000000e+00 : f32
    %49 = vector.broadcast %cst_30 : f32 to vector<1x16x16xf32>
    %50 = arith.cmpf ogt, %48, %49 : vector<1x16x16xf32>
    %cst_31 = arith.constant -1.000000e+09 : f32
    %51 = vector.shape_cast %50 : vector<1x16x16xi1> to vector<1x16x16xi1>
    %52 = vector.broadcast %51 : vector<1x16x16xi1> to vector<2x16x16xi1>
    %53 = vector.broadcast %cst_31 : f32 to vector<2x16x16xf32>
    %54 = arith.select %52, %47, %53 : vector<2x16x16xi1>, vector<2x16x16xf32>
    %cst_32 = arith.constant dense<0xFF800000> : vector<2x16xf32>
    %55 = vector.multi_reduction <maximumf>, %54, %cst_32 [2] : vector<2x16x16xf32> to vector<2x16xf32>
    %56 = vector.shape_cast %55 : vector<2x16xf32> to vector<2x16x1xf32>
    %57 = vector.broadcast %56 : vector<2x16x1xf32> to vector<2x16x16xf32>
    %58 = arith.subf %54, %57 : vector<2x16x16xf32>
    %59 = math.exp %58 : vector<2x16x16xf32>
    %cst_33 = arith.constant dense<0.000000e+00> : vector<2x16xf32>
    %60 = vector.multi_reduction <add>, %59, %cst_33 [2] : vector<2x16x16xf32> to vector<2x16xf32>
    %61 = vector.shape_cast %60 : vector<2x16xf32> to vector<2x16x1xf32>
    %62 = tpu.reciprocal %61 {approx = true} : vector<2x16x1xf32> -> vector<2x16x1xf32>
    %63 = vector.broadcast %62 : vector<2x16x1xf32> to vector<2x16x16xf32>
    %64 = arith.mulf %59, %63 : vector<2x16x16xf32>
    %65 = vector.extract_strided_slice %25 {offsets = [0, 0], sizes = [16, 32], strides = [1, 1]} : vector<16x64xf32> to vector<16x32xf32>
    %66 = vector.extract_strided_slice %25 {offsets = [0, 32], sizes = [16, 32], strides = [1, 1]} : vector<16x64xf32> to vector<16x32xf32>
    %67 = vector.shape_cast %65 : vector<16x32xf32> to vector<1x16x32xf32>
    %68 = vector.shape_cast %66 : vector<16x32xf32> to vector<1x16x32xf32>
    %69 = tpu.concatenate %67, %68 in 0 : vector<1x16x32xf32>, vector<1x16x32xf32> -> vector<2x16x32xf32>
    "tpu.trace_start"() <{level = 10 : i32, message = "hij,hjd->hid"}> : () -> ()
    %cst_34 = arith.constant dense<0.000000e+00> : vector<2x16x32xf32>
    %70 = tpu.matmul %64, %69, %cst_34 {dimension_numbers = #tpu.dot_dimension_numbers<[2], [1], [1], [2], [0, 0, 0, 1, 1, 2], [0], [0]>} : vector<2x16x16xf32>, vector<2x16x32xf32>, vector<2x16x32xf32> -> vector<2x16x32xf32>
    "tpu.trace_stop"() : () -> ()
    %71 = vector.extract_strided_slice %70 {offsets = [0, 0, 0], sizes = [1, 16, 32], strides = [1, 1, 1]} : vector<2x16x32xf32> to vector<1x16x32xf32>
    %72 = vector.shape_cast %71 : vector<1x16x32xf32> to vector<16x32xf32>
    %73 = vector.extract_strided_slice %70 {offsets = [1, 0, 0], sizes = [1, 16, 32], strides = [1, 1, 1]} : vector<2x16x32xf32> to vector<1x16x32xf32>
    %74 = vector.shape_cast %73 : vector<1x16x32xf32> to vector<16x32xf32>
    %75 = tpu.concatenate %72, %74 in 1 : vector<16x32xf32>, vector<16x32xf32> -> vector<16x64xf32>
    %76 = vector.broadcast %10 : vector<1x64xf32> to vector<16x64xf32>
    %77 = arith.addf %75, %76 : vector<16x64xf32>
    %cst_35 = arith.constant dense<0.000000e+00> : vector<64xf32>
    %78 = vector.multi_reduction <add>, %77, %cst_35 [0] : vector<16x64xf32> to vector<64xf32>
    %79 = vector.shape_cast %78 : vector<64xf32> to vector<1x64xf32>
    %cst_36 = arith.constant 1.600000e+01 : f32
    %80 = vector.broadcast %cst_36 : f32 to vector<1x64xf32>
    %81 = arith.divf %79, %80 : vector<1x64xf32>
    %82 = vector.broadcast %81 : vector<1x64xf32> to vector<16x64xf32>
    %83 = arith.subf %77, %82 : vector<16x64xf32>
    %84 = arith.mulf %83, %83 : vector<16x64xf32>
    %cst_37 = arith.constant dense<0.000000e+00> : vector<64xf32>
    %85 = vector.multi_reduction <add>, %84, %cst_37 [0] : vector<16x64xf32> to vector<64xf32>
    %86 = vector.shape_cast %85 : vector<64xf32> to vector<1x64xf32>
    %cst_38 = arith.constant 1.600000e+01 : f32
    %87 = vector.broadcast %cst_38 : f32 to vector<1x64xf32>
    %88 = arith.divf %86, %87 : vector<1x64xf32>
    %89 = vector.broadcast %81 : vector<1x64xf32> to vector<16x64xf32>
    %90 = arith.subf %77, %89 : vector<16x64xf32>
    %cst_39 = arith.constant 9.99999974E-6 : f32
    %91 = vector.broadcast %cst_39 : f32 to vector<1x64xf32>
    %92 = arith.addf %88, %91 : vector<1x64xf32>
    %93 = math.rsqrt %92 : vector<1x64xf32>
    %94 = vector.broadcast %93 : vector<1x64xf32> to vector<16x64xf32>
    %95 = arith.mulf %90, %94 : vector<16x64xf32>
    %96 = vector.broadcast %15 : vector<1x64xf32> to vector<16x64xf32>
    %97 = arith.mulf %95, %96 : vector<16x64xf32>
    %98 = vector.broadcast %16 : vector<1x64xf32> to vector<16x64xf32>
    %99 = arith.addf %97, %98 : vector<16x64xf32>
    %cst_40 = arith.constant 0.000000e+00 : f32
    %100 = vector.broadcast %cst_40 : f32 to vector<16x64xf32>
    %101 = arith.cmpf oge, %99, %100 : vector<16x64xf32>
    %cst_41 = arith.constant 1.000000e-01 : f32
    %102 = vector.broadcast %cst_41 : f32 to vector<16x64xf32>
    %103 = arith.mulf %102, %99 : vector<16x64xf32>
    %104 = arith.select %101, %99, %103 : vector<16x64xi1>, vector<16x64xf32>
    %cst_42 = arith.constant dense<0.000000e+00> : vector<16x32xf32>
    %105 = tpu.matmul %104, %6, %cst_42 {dimension_numbers = #tpu.dot_dimension_numbers<[1], [0], [0], [1], [0, 0, 1, 1], [], []>} : vector<16x64xf32>, vector<64x32xf32>, vector<16x32xf32> -> vector<16x32xf32>
    %106 = vector.broadcast %11 : vector<1x32xf32> to vector<16x32xf32>
    %107 = arith.addf %105, %106 : vector<16x32xf32>
    %cst_43 = arith.constant dense<0.000000e+00> : vector<32xf32>
    %108 = vector.multi_reduction <add>, %107, %cst_43 [0] : vector<16x32xf32> to vector<32xf32>
    %109 = vector.shape_cast %108 : vector<32xf32> to vector<1x32xf32>
    %cst_44 = arith.constant 1.600000e+01 : f32
    %110 = vector.broadcast %cst_44 : f32 to vector<1x32xf32>
    %111 = arith.divf %109, %110 : vector<1x32xf32>
    %112 = vector.broadcast %111 : vector<1x32xf32> to vector<16x32xf32>
    %113 = arith.subf %107, %112 : vector<16x32xf32>
    %114 = arith.mulf %113, %113 : vector<16x32xf32>
    %cst_45 = arith.constant dense<0.000000e+00> : vector<32xf32>
    %115 = vector.multi_reduction <add>, %114, %cst_45 [0] : vector<16x32xf32> to vector<32xf32>
    %116 = vector.shape_cast %115 : vector<32xf32> to vector<1x32xf32>
    %cst_46 = arith.constant 1.600000e+01 : f32
    %117 = vector.broadcast %cst_46 : f32 to vector<1x32xf32>
    %118 = arith.divf %116, %117 : vector<1x32xf32>
    %119 = vector.broadcast %111 : vector<1x32xf32> to vector<16x32xf32>
    %120 = arith.subf %107, %119 : vector<16x32xf32>
    %cst_47 = arith.constant 9.99999974E-6 : f32
    %121 = vector.broadcast %cst_47 : f32 to vector<1x32xf32>
    %122 = arith.addf %118, %121 : vector<1x32xf32>
    %123 = math.rsqrt %122 : vector<1x32xf32>
    %124 = vector.broadcast %123 : vector<1x32xf32> to vector<16x32xf32>
    %125 = arith.mulf %120, %124 : vector<16x32xf32>
    %126 = vector.broadcast %17 : vector<1x32xf32> to vector<16x32xf32>
    %127 = arith.mulf %125, %126 : vector<16x32xf32>
    %128 = vector.broadcast %18 : vector<1x32xf32> to vector<16x32xf32>
    %129 = arith.addf %127, %128 : vector<16x32xf32>
    %cst_48 = arith.constant 0.000000e+00 : f32
    %130 = vector.broadcast %cst_48 : f32 to vector<16x32xf32>
    %131 = arith.cmpf oge, %129, %130 : vector<16x32xf32>
    %cst_49 = arith.constant 1.000000e-01 : f32
    %132 = vector.broadcast %cst_49 : f32 to vector<16x32xf32>
    %133 = arith.mulf %132, %129 : vector<16x32xf32>
    %134 = arith.select %131, %129, %133 : vector<16x32xi1>, vector<16x32xf32>
    %135 = vector.extract_strided_slice %7 {offsets = [0, 0], sizes = [1, 32], strides = [1, 1]} : vector<8x32xf32> to vector<1x32xf32>
    %136 = vector.broadcast %135 : vector<1x32xf32> to vector<16x32xf32>
    %137 = arith.mulf %134, %136 : vector<16x32xf32>
    %cst_50 = arith.constant dense<0.000000e+00> : vector<16xf32>
    %138 = vector.multi_reduction <add>, %137, %cst_50 [1] : vector<16x32xf32> to vector<16xf32>
    %139 = vector.shape_cast %138 : vector<16xf32> to vector<16x1xf32>
    %140 = vector.extract_strided_slice %7 {offsets = [1, 0], sizes = [1, 32], strides = [1, 1]} : vector<8x32xf32> to vector<1x32xf32>
    %141 = vector.broadcast %140 : vector<1x32xf32> to vector<16x32xf32>
    %142 = arith.mulf %134, %141 : vector<16x32xf32>
    %cst_51 = arith.constant dense<0.000000e+00> : vector<16xf32>
    %143 = vector.multi_reduction <add>, %142, %cst_51 [1] : vector<16x32xf32> to vector<16xf32>
    %144 = vector.shape_cast %143 : vector<16xf32> to vector<16x1xf32>
    %145 = vector.extract_strided_slice %7 {offsets = [2, 0], sizes = [1, 32], strides = [1, 1]} : vector<8x32xf32> to vector<1x32xf32>
    %146 = vector.broadcast %145 : vector<1x32xf32> to vector<16x32xf32>
    %147 = arith.mulf %134, %146 : vector<16x32xf32>
    %cst_52 = arith.constant dense<0.000000e+00> : vector<16xf32>
    %148 = vector.multi_reduction <add>, %147, %cst_52 [1] : vector<16x32xf32> to vector<16xf32>
    %149 = vector.shape_cast %148 : vector<16xf32> to vector<16x1xf32>
    %150 = vector.extract_strided_slice %7 {offsets = [3, 0], sizes = [1, 32], strides = [1, 1]} : vector<8x32xf32> to vector<1x32xf32>
    %151 = vector.broadcast %150 : vector<1x32xf32> to vector<16x32xf32>
    %152 = arith.mulf %134, %151 : vector<16x32xf32>
    %cst_53 = arith.constant dense<0.000000e+00> : vector<16xf32>
    %153 = vector.multi_reduction <add>, %152, %cst_53 [1] : vector<16x32xf32> to vector<16xf32>
    %154 = vector.shape_cast %153 : vector<16xf32> to vector<16x1xf32>
    %155 = vector.extract_strided_slice %7 {offsets = [4, 0], sizes = [1, 32], strides = [1, 1]} : vector<8x32xf32> to vector<1x32xf32>
    %156 = vector.broadcast %155 : vector<1x32xf32> to vector<16x32xf32>
    %157 = arith.mulf %134, %156 : vector<16x32xf32>
    %cst_54 = arith.constant dense<0.000000e+00> : vector<16xf32>
    %158 = vector.multi_reduction <add>, %157, %cst_54 [1] : vector<16x32xf32> to vector<16xf32>
    %159 = vector.shape_cast %158 : vector<16xf32> to vector<16x1xf32>
    %160 = vector.extract_strided_slice %7 {offsets = [5, 0], sizes = [1, 32], strides = [1, 1]} : vector<8x32xf32> to vector<1x32xf32>
    %161 = vector.broadcast %160 : vector<1x32xf32> to vector<16x32xf32>
    %162 = arith.mulf %134, %161 : vector<16x32xf32>
    %cst_55 = arith.constant dense<0.000000e+00> : vector<16xf32>
    %163 = vector.multi_reduction <add>, %162, %cst_55 [1] : vector<16x32xf32> to vector<16xf32>
    %164 = vector.shape_cast %163 : vector<16xf32> to vector<16x1xf32>
    %165 = vector.extract_strided_slice %7 {offsets = [6, 0], sizes = [1, 32], strides = [1, 1]} : vector<8x32xf32> to vector<1x32xf32>
    %166 = vector.broadcast %165 : vector<1x32xf32> to vector<16x32xf32>
    %167 = arith.mulf %134, %166 : vector<16x32xf32>
    %cst_56 = arith.constant dense<0.000000e+00> : vector<16xf32>
    %168 = vector.multi_reduction <add>, %167, %cst_56 [1] : vector<16x32xf32> to vector<16xf32>
    %169 = vector.shape_cast %168 : vector<16xf32> to vector<16x1xf32>
    %170 = vector.extract_strided_slice %7 {offsets = [7, 0], sizes = [1, 32], strides = [1, 1]} : vector<8x32xf32> to vector<1x32xf32>
    %171 = vector.broadcast %170 : vector<1x32xf32> to vector<16x32xf32>
    %172 = arith.mulf %134, %171 : vector<16x32xf32>
    %cst_57 = arith.constant dense<0.000000e+00> : vector<16xf32>
    %173 = vector.multi_reduction <add>, %172, %cst_57 [1] : vector<16x32xf32> to vector<16xf32>
    %174 = vector.shape_cast %173 : vector<16xf32> to vector<16x1xf32>
    %175 = tpu.concatenate %139, %144, %149, %154, %159, %164, %169, %174 in 1 : vector<16x1xf32>, vector<16x1xf32>, vector<16x1xf32>, vector<16x1xf32>, vector<16x1xf32>, vector<16x1xf32>, vector<16x1xf32>, vector<16x1xf32> -> vector<16x8xf32>
    %176 = vector.broadcast %12 : vector<1x8xf32> to vector<16x8xf32>
    %177 = arith.addf %175, %176 : vector<16x8xf32>
    %cst_58 = arith.constant dense<0.000000e+00> : vector<8xf32>
    %178 = vector.multi_reduction <add>, %177, %cst_58 [0] : vector<16x8xf32> to vector<8xf32>
    %179 = vector.shape_cast %178 : vector<8xf32> to vector<1x8xf32>
    %cst_59 = arith.constant 1.600000e+01 : f32
    %180 = vector.broadcast %cst_59 : f32 to vector<1x8xf32>
    %181 = arith.divf %179, %180 : vector<1x8xf32>
    %182 = vector.broadcast %181 : vector<1x8xf32> to vector<16x8xf32>
    %183 = arith.subf %177, %182 : vector<16x8xf32>
    %184 = arith.mulf %183, %183 : vector<16x8xf32>
    %cst_60 = arith.constant dense<0.000000e+00> : vector<8xf32>
    %185 = vector.multi_reduction <add>, %184, %cst_60 [0] : vector<16x8xf32> to vector<8xf32>
    %186 = vector.shape_cast %185 : vector<8xf32> to vector<1x8xf32>
    %cst_61 = arith.constant 1.600000e+01 : f32
    %187 = vector.broadcast %cst_61 : f32 to vector<1x8xf32>
    %188 = arith.divf %186, %187 : vector<1x8xf32>
    %189 = vector.broadcast %181 : vector<1x8xf32> to vector<16x8xf32>
    %190 = arith.subf %177, %189 : vector<16x8xf32>
    %cst_62 = arith.constant 9.99999974E-6 : f32
    %191 = vector.broadcast %cst_62 : f32 to vector<1x8xf32>
    %192 = arith.addf %188, %191 : vector<1x8xf32>
    %193 = math.rsqrt %192 : vector<1x8xf32>
    %194 = vector.broadcast %193 : vector<1x8xf32> to vector<16x8xf32>
    %195 = arith.mulf %190, %194 : vector<16x8xf32>
    %196 = vector.broadcast %19 : vector<1x8xf32> to vector<16x8xf32>
    %197 = arith.mulf %195, %196 : vector<16x8xf32>
    %198 = vector.broadcast %20 : vector<1x8xf32> to vector<16x8xf32>
    %199 = arith.addf %197, %198 : vector<16x8xf32>
    %cst_63 = arith.constant 0.000000e+00 : f32
    %200 = vector.broadcast %cst_63 : f32 to vector<16x8xf32>
    %201 = arith.cmpf oge, %199, %200 : vector<16x8xf32>
    %cst_64 = arith.constant 1.000000e-01 : f32
    %202 = vector.broadcast %cst_64 : f32 to vector<16x8xf32>
    %203 = arith.mulf %202, %199 : vector<16x8xf32>
    %204 = arith.select %201, %199, %203 : vector<16x8xi1>, vector<16x8xf32>
    %205 = vector.extract_strided_slice %8 {offsets = [0, 0], sizes = [1, 8], strides = [1, 1]} : vector<4x8xf32> to vector<1x8xf32>
    %206 = vector.broadcast %205 : vector<1x8xf32> to vector<16x8xf32>
    %207 = arith.mulf %204, %206 : vector<16x8xf32>
    %cst_65 = arith.constant dense<0.000000e+00> : vector<16xf32>
    %208 = vector.multi_reduction <add>, %207, %cst_65 [1] : vector<16x8xf32> to vector<16xf32>
    %209 = vector.shape_cast %208 : vector<16xf32> to vector<16x1xf32>
    %210 = vector.extract_strided_slice %8 {offsets = [1, 0], sizes = [1, 8], strides = [1, 1]} : vector<4x8xf32> to vector<1x8xf32>
    %211 = vector.broadcast %210 : vector<1x8xf32> to vector<16x8xf32>
    %212 = arith.mulf %204, %211 : vector<16x8xf32>
    %cst_66 = arith.constant dense<0.000000e+00> : vector<16xf32>
    %213 = vector.multi_reduction <add>, %212, %cst_66 [1] : vector<16x8xf32> to vector<16xf32>
    %214 = vector.shape_cast %213 : vector<16xf32> to vector<16x1xf32>
    %215 = vector.extract_strided_slice %8 {offsets = [2, 0], sizes = [1, 8], strides = [1, 1]} : vector<4x8xf32> to vector<1x8xf32>
    %216 = vector.broadcast %215 : vector<1x8xf32> to vector<16x8xf32>
    %217 = arith.mulf %204, %216 : vector<16x8xf32>
    %cst_67 = arith.constant dense<0.000000e+00> : vector<16xf32>
    %218 = vector.multi_reduction <add>, %217, %cst_67 [1] : vector<16x8xf32> to vector<16xf32>
    %219 = vector.shape_cast %218 : vector<16xf32> to vector<16x1xf32>
    %220 = vector.extract_strided_slice %8 {offsets = [3, 0], sizes = [1, 8], strides = [1, 1]} : vector<4x8xf32> to vector<1x8xf32>
    %221 = vector.broadcast %220 : vector<1x8xf32> to vector<16x8xf32>
    %222 = arith.mulf %204, %221 : vector<16x8xf32>
    %cst_68 = arith.constant dense<0.000000e+00> : vector<16xf32>
    %223 = vector.multi_reduction <add>, %222, %cst_68 [1] : vector<16x8xf32> to vector<16xf32>
    %224 = vector.shape_cast %223 : vector<16xf32> to vector<16x1xf32>
    %225 = tpu.concatenate %209, %214, %219, %224 in 1 : vector<16x1xf32>, vector<16x1xf32>, vector<16x1xf32>, vector<16x1xf32> -> vector<16x4xf32>
    %226 = vector.broadcast %13 : vector<1x4xf32> to vector<16x4xf32>
    %227 = arith.addf %225, %226 : vector<16x4xf32>
    %cst_69 = arith.constant dense<0.000000e+00> : vector<4xf32>
    %228 = vector.multi_reduction <add>, %227, %cst_69 [0] : vector<16x4xf32> to vector<4xf32>
    %229 = vector.shape_cast %228 : vector<4xf32> to vector<1x4xf32>
    %cst_70 = arith.constant 1.600000e+01 : f32
    %230 = vector.broadcast %cst_70 : f32 to vector<1x4xf32>
    %231 = arith.divf %229, %230 : vector<1x4xf32>
    %232 = vector.broadcast %231 : vector<1x4xf32> to vector<16x4xf32>
    %233 = arith.subf %227, %232 : vector<16x4xf32>
    %234 = arith.mulf %233, %233 : vector<16x4xf32>
    %cst_71 = arith.constant dense<0.000000e+00> : vector<4xf32>
    %235 = vector.multi_reduction <add>, %234, %cst_71 [0] : vector<16x4xf32> to vector<4xf32>
    %236 = vector.shape_cast %235 : vector<4xf32> to vector<1x4xf32>
    %cst_72 = arith.constant 1.600000e+01 : f32
    %237 = vector.broadcast %cst_72 : f32 to vector<1x4xf32>
    %238 = arith.divf %236, %237 : vector<1x4xf32>
    %239 = vector.broadcast %231 : vector<1x4xf32> to vector<16x4xf32>
    %240 = arith.subf %227, %239 : vector<16x4xf32>
    %cst_73 = arith.constant 9.99999974E-6 : f32
    %241 = vector.broadcast %cst_73 : f32 to vector<1x4xf32>
    %242 = arith.addf %238, %241 : vector<1x4xf32>
    %243 = math.rsqrt %242 : vector<1x4xf32>
    %244 = vector.broadcast %243 : vector<1x4xf32> to vector<16x4xf32>
    %245 = arith.mulf %240, %244 : vector<16x4xf32>
    %246 = vector.broadcast %21 : vector<1x4xf32> to vector<16x4xf32>
    %247 = arith.mulf %245, %246 : vector<16x4xf32>
    %248 = vector.broadcast %22 : vector<1x4xf32> to vector<16x4xf32>
    %249 = arith.addf %247, %248 : vector<16x4xf32>
    %cst_74 = arith.constant 0.000000e+00 : f32
    %250 = vector.broadcast %cst_74 : f32 to vector<16x4xf32>
    %251 = arith.cmpf oge, %249, %250 : vector<16x4xf32>
    %cst_75 = arith.constant 1.000000e-01 : f32
    %252 = vector.broadcast %cst_75 : f32 to vector<16x4xf32>
    %253 = arith.mulf %252, %249 : vector<16x4xf32>
    %254 = arith.select %251, %249, %253 : vector<16x4xi1>, vector<16x4xf32>
    %255 = vector.extract_strided_slice %9 {offsets = [0, 0], sizes = [1, 4], strides = [1, 1]} : vector<2x4xf32> to vector<1x4xf32>
    %256 = vector.broadcast %255 : vector<1x4xf32> to vector<16x4xf32>
    %257 = arith.mulf %254, %256 : vector<16x4xf32>
    %cst_76 = arith.constant dense<0.000000e+00> : vector<16xf32>
    %258 = vector.multi_reduction <add>, %257, %cst_76 [1] : vector<16x4xf32> to vector<16xf32>
    %259 = vector.shape_cast %258 : vector<16xf32> to vector<16x1xf32>
    %260 = vector.extract_strided_slice %9 {offsets = [1, 0], sizes = [1, 4], strides = [1, 1]} : vector<2x4xf32> to vector<1x4xf32>
    %261 = vector.broadcast %260 : vector<1x4xf32> to vector<16x4xf32>
    %262 = arith.mulf %254, %261 : vector<16x4xf32>
    %cst_77 = arith.constant dense<0.000000e+00> : vector<16xf32>
    %263 = vector.multi_reduction <add>, %262, %cst_77 [1] : vector<16x4xf32> to vector<16xf32>
    %264 = vector.shape_cast %263 : vector<16xf32> to vector<16x1xf32>
    %265 = tpu.concatenate %259, %264 in 1 : vector<16x1xf32>, vector<16x1xf32> -> vector<16x2xf32>
    %266 = vector.broadcast %14 : vector<1x2xf32> to vector<16x2xf32>
    %267 = arith.addf %265, %266 : vector<16x2xf32>
    %cst_78 = arith.constant dense<0.000000e+00> : vector<2xf32>
    %268 = vector.multi_reduction <add>, %267, %cst_78 [0] : vector<16x2xf32> to vector<2xf32>
    %269 = vector.shape_cast %268 : vector<2xf32> to vector<1x2xf32>
    %cst_79 = arith.constant 1.600000e+01 : f32
    %270 = vector.broadcast %cst_79 : f32 to vector<1x2xf32>
    %271 = arith.divf %269, %270 : vector<1x2xf32>
    %272 = vector.broadcast %271 : vector<1x2xf32> to vector<16x2xf32>
    %273 = arith.subf %267, %272 : vector<16x2xf32>
    %274 = arith.mulf %273, %273 : vector<16x2xf32>
    %cst_80 = arith.constant dense<0.000000e+00> : vector<2xf32>
    %275 = vector.multi_reduction <add>, %274, %cst_80 [0] : vector<16x2xf32> to vector<2xf32>
    %276 = vector.shape_cast %275 : vector<2xf32> to vector<1x2xf32>
    %cst_81 = arith.constant 1.600000e+01 : f32
    %277 = vector.broadcast %cst_81 : f32 to vector<1x2xf32>
    %278 = arith.divf %276, %277 : vector<1x2xf32>
    %279 = vector.broadcast %271 : vector<1x2xf32> to vector<16x2xf32>
    %280 = arith.subf %267, %279 : vector<16x2xf32>
    %cst_82 = arith.constant 9.99999974E-6 : f32
    %281 = vector.broadcast %cst_82 : f32 to vector<1x2xf32>
    %282 = arith.addf %278, %281 : vector<1x2xf32>
    %283 = math.rsqrt %282 : vector<1x2xf32>
    %284 = vector.broadcast %283 : vector<1x2xf32> to vector<16x2xf32>
    %285 = arith.mulf %280, %284 : vector<16x2xf32>
    %286 = vector.broadcast %23 : vector<1x2xf32> to vector<16x2xf32>
    %287 = arith.mulf %285, %286 : vector<16x2xf32>
    %288 = vector.broadcast %24 : vector<1x2xf32> to vector<16x2xf32>
    %289 = arith.addf %287, %288 : vector<16x2xf32>
    %cst_83 = arith.constant 0.000000e+00 : f32
    %290 = vector.broadcast %cst_83 : f32 to vector<16x2xf32>
    %291 = arith.cmpf oge, %289, %290 : vector<16x2xf32>
    %cst_84 = arith.constant 1.000000e-01 : f32
    %292 = vector.broadcast %cst_84 : f32 to vector<16x2xf32>
    %293 = arith.mulf %292, %289 : vector<16x2xf32>
    %294 = arith.select %291, %289, %293 : vector<16x2xi1>, vector<16x2xf32>
    %cst_85 = arith.constant dense<0xFF800000> : vector<16xf32>
    %295 = vector.multi_reduction <maximumf>, %294, %cst_85 [1] : vector<16x2xf32> to vector<16xf32>
    %296 = vector.shape_cast %295 : vector<16xf32> to vector<16x1xf32>
    %297 = vector.broadcast %296 : vector<16x1xf32> to vector<16x2xf32>
    %298 = arith.subf %294, %297 : vector<16x2xf32>
    %299 = math.exp %298 : vector<16x2xf32>
    %cst_86 = arith.constant dense<0.000000e+00> : vector<16xf32>
    %300 = vector.multi_reduction <add>, %299, %cst_86 [1] : vector<16x2xf32> to vector<16xf32>
    %301 = vector.shape_cast %300 : vector<16xf32> to vector<16x1xf32>
    %302 = vector.broadcast %301 : vector<16x1xf32> to vector<16x2xf32>
    %303 = arith.divf %299, %302 : vector<16x2xf32>
    %c0_87 = arith.constant 0 : index
    %c0_88 = arith.constant 0 : index
    %c0_89 = arith.constant 0 : index
    %304 = vector.load %arg4[%c0_87, %c0_88, %c0_89] : memref<1x16x2xf32, #tpu.memory_space<vmem>>, vector<1x16x2xf32>
    %305 = vector.shape_cast %304 : vector<1x16x2xf32> to vector<16x2xf32>
    %306 = vector.shape_cast %303 : vector<16x2xf32> to vector<1x16x2xf32>
    tpu.vector_store %arg4[%c0_87, %c0_88, %c0_89], %306 {strides = array<i32>} : memref<1x16x2xf32, #tpu.memory_space<vmem>>, vector<1x16x2xf32>,
    return
  }
  func.func @transform_0(%arg0: i32) -> (i32, i32, i32) {
    %c0_i32 = arith.constant 0 : i32
    %c0_i32_0 = arith.constant 0 : i32
    %c0_i32_1 = arith.constant 0 : i32
    return %arg0, %c0_i32, %c0_i32_0 : i32, i32, i32
  }
  func.func @transform_1(%arg0: i32) -> (i32, i32, i32) {
    %c0_i32 = arith.constant 0 : i32
    %c0_i32_0 = arith.constant 0 : i32
    %c0_i32_1 = arith.constant 0 : i32
    return %arg0, %c0_i32, %c0_i32_0 : i32, i32, i32
  }
  func.func @transform_2(%arg0: i32) -> (i32, i32) {
    %c0_i32 = arith.constant 0 : i32
    %c0_i32_0 = arith.constant 0 : i32
    %c0_i32_1 = arith.constant 0 : i32
    return %c0_i32, %c0_i32_0 : i32, i32
  }
  func.func @transform_3(%arg0: i32) -> (i32, i32, i32) {
    %c0_i32 = arith.constant 0 : i32
    %c0_i32_0 = arith.constant 0 : i32
    %c0_i32_1 = arith.constant 0 : i32
    return %arg0, %c0_i32, %c0_i32_0 : i32, i32, i32
  }
}

</mosaic_0001>

<llo_original>
// kernel: net_forward.1
$region0: #{net_forward.1}
  #allocation0 [shape = 'u32[]', space=smem, size = 0x4, offset = 0x4, fixed_abs, tag = 'smem constant byte address 0x4 - core index']
  #allocation1 [shape = 'u32[144,128]{1,0:T(1,128)}', space=vmem, size = 0x12000, scoped, tag = 'internal scratch']
  %s0 = inlined_call_operand.vmem [shape: f32[4,16,72], index: 0, kind: input, shape index: {}]
  %s1 = inlined_call_operand.vmem [shape: f32[4,16,16], index: 1, kind: input, shape index: {}]
  %s2 = inlined_call_operand.vmem [shape: f32[240,64], index: 2, kind: input, shape index: {}]
  %s3 = inlined_call_operand.vmem [shape: f32[4,16,2], index: 3, kind: output, shape index: {}]
  %s4 = sld [smem:[#allocation0]]
  $region45: #{net_forward.1} parent=0
    _
  %s6 = ssub.s32 1, %s4
  %s7 = scalar_select 0, %s6, %s4
  loop: start=0, step=1, limit=6
  $region2: #{net_forward.1} parent=0 // loop_pre_header
    _
  $region3: #{net_forward.1} parent=0 // loop_header
    %s9 = sphi 0, %s13
    %p10 = scmp.ge.s32.totalorder %s9, 6
    %s19 = sphi 0, %s21
    %s22 = sphi 0, %s19
    %s23 = sphi 0, %s22
    %s39 = sphi 0, %s23
    %s45 = sphi 0, %s47
    %s48 = sphi 0, %s45
    %s49 = sphi 0, %s48
    %s65 = sphi 0, %s49
    %s69 = sphi 0, %s69
    %s71 = sphi 0, %s69
    %s72 = sphi 0, %s71
    %s86 = sphi 0, %s72
    %s92 = sphi 0, %s94
    %s95 = sphi 0, %s92
    %s96 = sphi 0, %s95
    %s112 = sphi 0, %s96
  $region4: #{net_forward.1} parent=0 // loop_header_branch
    %12 = sbr.rel (%p10) target = $region8
  $region5: #{net_forward.1} parent=0 // loop_body
    %s14 = ssub.s32 %s9, 1
    %s15 = ssub.s32 %s9, 2
    %s16 = sadd.s32 %s9, 1
    %s17 = ssub.s32 %s9, %s16
    %p18 = scmp.eq.s32.totalorder %s17, 0
    %s20 = sadd.s32 %s19, 1
    %s21 = scalar_select %p18, %s19, %s20
    %p24 = pneg %p18
    %p25 = scmp.eq.s32.totalorder %s9, 3
    %p26 = por %p24, %p25
    %p27 = scmp.ne.s32.totalorder %s19, %s22
    %p28 = scmp.eq.s32.totalorder %s9, 0
    %p29 = por %p27, %p28
    %p30 = scmp.ne.s32.totalorder %s19, %s22
    %p31 = scmp.eq.s32.totalorder %s14, 3
    %p32 = por %p30, %p31
    %p33 = scmp.ne.s32.totalorder %s22, %s23
    %p34 = scmp.eq.s32.totalorder %s14, 0
    %p35 = por %p33, %p34
    %p36 = scmp.ne.s32.totalorder %s22, %s23
    %p37 = scmp.eq.s32.totalorder %s15, 3
    %p38 = por %p36, %p37
    %p40 = scmp.ne.s32.totalorder %s23, %s39
    %p41 = scmp.eq.s32.totalorder %s15, 0
    %p42 = por %p40, %p41
    %s43 = ssub.s32 %s9, %s16
    %p44 = scmp.eq.s32.totalorder %s43, 0
    %s46 = sadd.s32 %s45, 1
    %s47 = scalar_select %p44, %s45, %s46
    %p50 = pneg %p44
    %p51 = scmp.eq.s32.totalorder %s9, 3
    %p52 = por %p50, %p51
    %p53 = scmp.ne.s32.totalorder %s45, %s48
    %p54 = scmp.eq.s32.totalorder %s9, 0
    %p55 = por %p53, %p54
    %p56 = scmp.ne.s32.totalorder %s45, %s48
    %p57 = scmp.eq.s32.totalorder %s14, 3
    %p58 = por %p56, %p57
    %p59 = scmp.ne.s32.totalorder %s48, %s49
    %p60 = scmp.eq.s32.totalorder %s14, 0
    %p61 = por %p59, %p60
    %p62 = scmp.ne.s32.totalorder %s48, %s49
    %p63 = scmp.eq.s32.totalorder %s15, 3
    %p64 = por %p62, %p63
    %p66 = scmp.ne.s32.totalorder %s49, %s65
    %p67 = scmp.eq.s32.totalorder %s15, 0
    %p68 = por %p66, %p67
    %s70 = sadd.s32 %s69, 1
    %p73 = scmp.eq.s32.totalorder %s9, 3
    %p74 = scmp.ne.s32.totalorder %s69, %s71
    %p75 = scmp.eq.s32.totalorder %s9, 0
    %p76 = por %p74, %p75
    %p77 = scmp.ne.s32.totalorder %s69, %s71
    %p78 = scmp.eq.s32.totalorder %s14, 3
    %p79 = por %p77, %p78
    %p80 = scmp.ne.s32.totalorder %s71, %s72
    %p81 = scmp.eq.s32.totalorder %s14, 0
    %p82 = por %p80, %p81
    %p83 = scmp.ne.s32.totalorder %s71, %s72
    %p84 = scmp.eq.s32.totalorder %s15, 3
    %p85 = por %p83, %p84
    %p87 = scmp.ne.s32.totalorder %s72, %s86
    %p88 = scmp.eq.s32.totalorder %s15, 0
    %p89 = por %p87, %p88
    %s90 = ssub.s32 %s9, %s16
    %p91 = scmp.eq.s32.totalorder %s90, 0
    %s93 = sadd.s32 %s92, 1
    %s94 = scalar_select %p91, %s92, %s93
    %p97 = pneg %p91
    %p98 = scmp.eq.s32.totalorder %s9, 3
    %p99 = por %p97, %p98
    %p100 = scmp.ne.s32.totalorder %s92, %s95
    %p101 = scmp.eq.s32.totalorder %s9, 0
    %p102 = por %p100, %p101
    %p103 = scmp.ne.s32.totalorder %s92, %s95
    %p104 = scmp.eq.s32.totalorder %s14, 3
    %p105 = por %p103, %p104
    %p106 = scmp.ne.s32.totalorder %s95, %s96
    %p107 = scmp.eq.s32.totalorder %s14, 0
    %p108 = por %p106, %p107
    %p109 = scmp.ne.s32.totalorder %s95, %s96
    %p110 = scmp.eq.s32.totalorder %s15, 3
    %p111 = por %p109, %p110
    %p113 = scmp.ne.s32.totalorder %s96, %s112
    %p114 = scmp.eq.s32.totalorder %s15, 0
    %p115 = por %p113, %p114
    %p116 = scmp.le.s32.totalorder 1, %s9
    %p117 = scmp.lt.s32.totalorder %s9, 5
    %p118 = pnand %p116, %p117
    %p119 = pneg %p118
    // Predicated region
    $region9: #{net_forward.1} parent=5 // pred_check
      _
    $region10: #{net_forward.1} parent=5 // pred_check_branch
      %121 = sbr.rel (%p118) target = $region12
    $region11: #{net_forward.1} parent=5 // pred_region
      %s122 = ssub.s32 %s9, 1
      // Predicated region
      $region13: #{net_forward.1} parent=11 // pred_check
        %p123 = pneg %p82
      $region14: #{net_forward.1} parent=11 // pred_check_branch
        %125 = sbr.rel (%p123) target = $region16
      $region15: #{net_forward.1} parent=11 // pred_region
        _
      $region16: #{net_forward.1} parent=11 // pred_fallthru
        _
    $region12: #{net_forward.1} parent=5 // pred_fallthru
      _
    %p126 = scmp.lt.s32.totalorder %s9, 4
    // Predicated region
    $region17: #{net_forward.1} parent=5 // pred_check
      %p127 = pneg %p126
    $region18: #{net_forward.1} parent=5 // pred_check_branch
      %129 = sbr.rel (%p127) target = $region20
    $region19: #{net_forward.1} parent=5 // pred_region
      // Predicated region
      $region21: #{net_forward.1} parent=19 // pred_check
        %p130 = pneg %p29
      $region22: #{net_forward.1} parent=19 // pred_check_branch
        %132 = sbr.rel (%p130) target = $region24
      $region23: #{net_forward.1} parent=19 // pred_region
        %p133 = scmp.lt.s32.totalorder %s9, 3
        %s134 = scalar_select %p133, %s9, 3
        %s135 = smul.addr %s134, 2
        %s136 = smul.addr %s135, 8
        %s137 = scalar_lea.vmem %s0, %s136
      $region24: #{net_forward.1} parent=19 // pred_fallthru
        _
      // Predicated region
      $region25: #{net_forward.1} parent=19 // pred_check
        %p138 = pneg %p55
      $region26: #{net_forward.1} parent=19 // pred_check_branch
        %140 = sbr.rel (%p138) target = $region28
      $region27: #{net_forward.1} parent=19 // pred_region
        %p141 = scmp.lt.s32.totalorder %s9, 3
        %s142 = scalar_select %p141, %s9, 3
        %s143 = smul.addr %s142, 2
        %s144 = smul.addr %s143, 8
        %s145 = scalar_lea.vmem %s1, %s144
      $region28: #{net_forward.1} parent=19 // pred_fallthru
        _
    $region20: #{net_forward.1} parent=5 // pred_fallthru
      _
    %p146 = scmp.le.s32.totalorder 1, %s9
    %p147 = scmp.lt.s32.totalorder %s9, 5
    %p148 = pnand %p146, %p147
    %p149 = pneg %p148
    // Predicated region
    $region29: #{net_forward.1} parent=5 // pred_check
      _
    $region30: #{net_forward.1} parent=5 // pred_check_branch
      %151 = sbr.rel (%p148) target = $region32
    $region31: #{net_forward.1} parent=5 // pred_region
      %s152 = ssub.s32 %s9, 1
      %p153 = scmp.lt.s32.totalorder %s14, 3
      %s154 = scalar_select %p153, %s14, 3
      %s155 = smul.addr %s154, 2
      %s156 = smul.addr %s155, 8
      %s157 = scalar_lea.vmem %s0, %s156
      %p158 = pneg %p35
      %p159 = pneg %p32
      %p160 = scmp.lt.s32.totalorder %s14, 3
      %s161 = scalar_select %p160, %s14, 3
      %s162 = smul.addr %s161, 2
      %s163 = smul.addr %s162, 8
      %s164 = scalar_lea.vmem %s1, %s163
      %p165 = pneg %p61
      %p166 = pneg %p58
      %p167 = pneg %p82
      %p168 = pneg %p79
      %p169 = pneg %p108
      %p170 = pneg %p105
      %p171 = scmp.lt.s32.totalorder %s14, 3
      %s172 = scalar_select %p171, %s14, 3
      %s173 = smul.addr %s172, 2
      %s174 = smul.addr %s173, 8
      %s175 = scalar_lea.vmem %s3, %s174
      %p176 = scmp.lt.s32.totalorder %s14, 3
      %s177 = scalar_select %p176, %s14, 3
      %s178 = smul.addr %s177, 2
      %s179 = smul.addr %s178, 8
      %s180 = scalar_lea.vmem %s0, %s179
      %p181 = scmp.lt.s32.totalorder %s14, 3
      %s182 = scalar_select %p181, %s14, 3
      %s183 = smul.addr %s182, 2
      %s184 = smul.addr %s183, 8
      %s185 = scalar_lea.vmem %s1, %s184
      %p186 = scmp.lt.s32.totalorder %s14, 3
      %s187 = scalar_select %p186, %s14, 3
      %s188 = smul.addr %s187, 2
      %s189 = smul.addr %s188, 8
      %s190 = scalar_lea.vmem %s3, %s189
      %v191 = vld [vmem:[%s180] sm:$0xff]
      %v192 = vld [vmem:[%s180 + $0x8] sm:$0xff]
      %v193 = vld [vmem:[%s185] sm:$0xff]
      %v194 = vld [vmem:[%s185 + $0x8] sm:$0xff]
      %v195 = vld [vmem:[%s2] sm:$0xff]
      %v196 = vld [vmem:[%s2 + $0x8] sm:$0xff]
      %v197 = vld [vmem:[%s2 + $0x10] sm:$0xff]
      %v198 = vld [vmem:[%s2 + $0x18] sm:$0xff]
      %v199 = vld [vmem:[%s2 + $0x20] sm:$0xff]
      %v200 = vld [vmem:[%s2 + $0x28] sm:$0xff]
      %v201 = vld [vmem:[%s2 + $0x30] sm:$0xff]
      %v202 = vld [vmem:[%s2 + $0x38] sm:$0xff]
      %v203 = vld [vmem:[%s2 + $0x40] sm:$0xff]
      %v204 = vld [vmem:[%s2 + $0x48] sm:$0xff]
      %v205 = vld [vmem:[%s2 + $0x50] sm:$0xff]
      %v206 = vld [vmem:[%s2 + $0x58] sm:$0xff]
      %v207 = vld [vmem:[%s2 + $0x60] sm:$0xff]
      %v208 = vld [vmem:[%s2 + $0x68] sm:$0xff]
      %v209 = vld [vmem:[%s2 + $0x70] sm:$0xff]
      %v210 = vld [vmem:[%s2 + $0x78] sm:$0xff]
      %v211 = vld [vmem:[%s2 + $0x80] sm:$0xff]
      %v212 = vld [vmem:[%s2 + $0x88] sm:$0xff]
      %v213 = vld [vmem:[%s2 + $0x90] sm:$0xff]
      %v214 = vld [vmem:[%s2 + $0x98] sm:$0xff]
      %v215 = vld [vmem:[%s2 + $0xa0] sm:$0xff]
      %v216 = vld [vmem:[%s2 + $0xa8] sm:$0xff]
      %v217 = vld [vmem:[%s2 + $0xb0] sm:$0xff]
      %v218 = vld [vmem:[%s2 + $0xb8] sm:$0xff]
      %v219 = vld [vmem:[%s2 + $0xc0] sm:$0xff]
      %v220 = vld [vmem:[%s2 + $0xc8] sm:$0xff]
      %v221 = vld [vmem:[%s2 + $0xd0] sm:$0xf]
      %v222 = vld [vmem:[%s2 + $0xd8] sm:$0x3]
      %v223 = vld [vmem:[%s2 + $0xe0] sm:$0x1]
      %v224 = vld [vmem:[%s2 + $0xe1] sm:$0x1]
      %v225 = vld [vmem:[%s2 + $0xe2] sm:$0x1]
      %v226 = vld [vmem:[%s2 + $0xe3] sm:$0x1]
      %v227 = vld [vmem:[%s2 + $0xe4] sm:$0x1]
      %v228 = vld [vmem:[%s2 + $0xe5] sm:$0x1]
      %v229 = vld [vmem:[%s2 + $0xe6] sm:$0x1]
      %v230 = vld [vmem:[%s2 + $0xe7] sm:$0x1]
      %v231 = vld [vmem:[%s2 + $0xe8] sm:$0x1]
      %v232 = vld [vmem:[%s2 + $0xe9] sm:$0x1]
      %v233 = vld [vmem:[%s2 + $0xea] sm:$0x1]
      %v234 = vld [vmem:[%s2 + $0xeb] sm:$0x1]
      %v235 = vld [vmem:[%s2 + $0xec] sm:$0x1]
      %v236 = vld [vmem:[%s2 + $0xed] sm:$0x1]
      %v237 = vld [vmem:[%s2 + $0xee] sm:$0x1]
      %vm238 = vcmask 588800
      %v240 = vsel %vm238, %v191, 0
      %v243 = vsel %vm238, %v192, 0
      %245 = vmatprep.subr.mxu0 0.0
      %246 = vmatpush1.msra.mxu0 %v195
      %247 = vmatprep.subr.mxu0 0.0
      %248 = vmatpush1.msra.mxu0 %v196
      %249 = vmatprep.subr.mxu0 0.0
      %250 = vmatpush1.msra.mxu0 %v197
      %251 = vmatprep.subr.mxu0 0.0
      %252 = vmatpush1.msra.mxu0 %v198
      %253 = vmatprep.subr.mxu0 0.0
      %254 = vmatpush1.msra.mxu0 %v199
      %255 = vmatprep.subr.mxu0 0.0
      %256 = vmatpush1.msra.mxu0 %v200
      %257 = vmatprep.subr.mxu0 0.0
      %258 = vmatpush1.msra.mxu0 %v201
      %259 = vmatprep.subr.mxu0 0.0
      %260 = vmatpush1.msra.mxu0 %v202
      %261 = vmatprep.subr.mxu0 0.0
      %262 = vmatpush1.msra.mxu0 %v203
      %263 = vmatprep.subr.mxu0 0.0
      %264 = vmatpush1.msra.mxu0 0.0
      %265 = vmatprep.subr.mxu0 0.0
      %266 = vmatpush1.msra.mxu0 0.0
      %267 = vmatprep.subr.mxu0 0.0
      %268 = vmatpush1.msra.mxu0 0.0
      %269 = vmatprep.subr.mxu0 0.0
      %270 = vmatpush1.msra.mxu0 0.0
      %271 = vmatprep.subr.mxu0 0.0
      %272 = vmatpush1.msra.mxu0 0.0
      %273 = vmatprep.subr.mxu0 0.0
      %274 = vmatpush1.msra.mxu0 0.0
      %275 = vmatprep.subr.mxu0 0.0
      %276 = vmatpush1.msra.mxu0 0.0
      %277 = vmatprep.subr.mxu0 0.0
      %278 = vmatpush1.msra.mxu0 0.0
      %279 = vmatprep.subr.mxu0 0.0
      %280 = vmatpush1.msra.mxu0 0.0
      %281 = vmatprep.subr.mxu0 0.0
      %282 = vmatpush1.msra.mxu0 0.0
      %283 = vmatprep.subr.mxu0 0.0
      %284 = vmatpush1.msra.mxu0 0.0
      %285 = vmatprep.subr.mxu0 0.0
      %286 = vmatpush1.msra.mxu0 0.0
      %287 = vmatprep.subr.mxu0 0.0
      %288 = vmatpush1.msra.mxu0 0.0
      %289 = vmatprep.subr.mxu0 0.0
      %290 = vmatpush1.msra.mxu0 0.0
      %291 = vmatprep.subr.mxu0 0.0
      %292 = vmatpush1.msra.mxu0 0.0
      %293 = vmatprep.subr.mxu0 0.0
      %294 = vmatpush1.msra.mxu0 0.0
      %295 = vmatprep.subr.mxu0 0.0
      %296 = vmatpush1.msra.mxu0 0.0
      %297 = vmatprep.subr.mxu0 0.0
      %298 = vmatpush1.msra.mxu0 0.0
      %299 = vmatprep.subr.mxu0 0.0
      %300 = vmatpush1.msra.mxu0 0.0
      %301 = vmatprep.subr.mxu0 0.0
      %302 = vmatpush1.msra.mxu0 0.0
      %303 = vmatprep.subr.mxu0 0.0
      %304 = vmatpush1.msra.mxu0 0.0
      %305 = vmatprep.subr.mxu0 0.0
      %306 = vmatpush1.msra.mxu0 0.0
      %307 = vmatprep.subr.mxu0 0.0
      %308 = vmatpush1.msra.mxu0 0.0
      %309 = vmatprep.mubr.f32.mxu0 0.0
      %310 = vmatmul.mubr.f32.gmra.mrb[0].mxu0 %v240
      %v311 = vpop.f32.mrb[0].mxu0
      %v312 = vadd.f32 0.0, %v311
      %v313 = vpop.f32.mrb[0].mxu0
      %314 = vmatprep.mubr.f32.mxu0 0.0
      %315 = vmatmul.mubr.f32.gmra.mrb[0].mxu0 %v243
      %v316 = vpop.f32.mrb[0].mxu0
      %v317 = vadd.f32 0.0, %v316
      %v318 = vpop.f32.mrb[0].mxu0
      %319 = vdwg.mxu0
      %vm320 = vcmask 523264
      %v322 = vsel %vm320, %v312, 0
      %v325 = vsel %vm320, %v317, 0
      %327 = vmatprep.subr.mxu0 0.0
      %328 = vmatpush1.msra.mxu0 %v204
      %329 = vmatprep.subr.mxu0 0.0
      %330 = vmatpush1.msra.mxu0 %v205
      %331 = vmatprep.subr.mxu0 0.0
      %332 = vmatpush1.msra.mxu0 %v206
      %333 = vmatprep.subr.mxu0 0.0
      %334 = vmatpush1.msra.mxu0 %v207
      %335 = vmatprep.subr.mxu0 0.0
      %336 = vmatpush1.msra.mxu0 %v208
      %337 = vmatprep.subr.mxu0 0.0
      %338 = vmatpush1.msra.mxu0 %v209
      %339 = vmatprep.subr.mxu0 0.0
      %340 = vmatpush1.msra.mxu0 %v210
      %341 = vmatprep.subr.mxu0 0.0
      %342 = vmatpush1.msra.mxu0 %v211
      %343 = vmatprep.subr.mxu0 0.0
      %344 = vmatpush1.msra.mxu0 0.0
      %345 = vmatprep.subr.mxu0 0.0
      %346 = vmatpush1.msra.mxu0 0.0
      %347 = vmatprep.subr.mxu0 0.0
      %348 = vmatpush1.msra.mxu0 0.0
      %349 = vmatprep.subr.mxu0 0.0
      %350 = vmatpush1.msra.mxu0 0.0
      %351 = vmatprep.subr.mxu0 0.0
      %352 = vmatpush1.msra.mxu0 0.0
      %353 = vmatprep.subr.mxu0 0.0
      %354 = vmatpush1.msra.mxu0 0.0
      %355 = vmatprep.subr.mxu0 0.0
      %356 = vmatpush1.msra.mxu0 0.0
      %357 = vmatprep.subr.mxu0 0.0
      %358 = vmatpush1.msra.mxu0 0.0
      %359 = vmatprep.subr.mxu0 0.0
      %360 = vmatpush1.msra.mxu0 0.0
      %361 = vmatprep.subr.mxu0 0.0
      %362 = vmatpush1.msra.mxu0 0.0
      %363 = vmatprep.subr.mxu0 0.0
      %364 = vmatpush1.msra.mxu0 0.0
      %365 = vmatprep.subr.mxu0 0.0
      %366 = vmatpush1.msra.mxu0 0.0
      %367 = vmatprep.subr.mxu0 0.0
      %368 = vmatpush1.msra.mxu0 0.0
      %369 = vmatprep.subr.mxu0 0.0
      %370 = vmatpush1.msra.mxu0 0.0
      %371 = vmatprep.subr.mxu0 0.0
      %372 = vmatpush1.msra.mxu0 0.0
      %373 = vmatprep.subr.mxu0 0.0
      %374 = vmatpush1.msra.mxu0 0.0
      %375 = vmatprep.subr.mxu0 0.0
      %376 = vmatpush1.msra.mxu0 0.0
      %377 = vmatprep.subr.mxu0 0.0
      %378 = vmatpush1.msra.mxu0 0.0
      %379 = vmatprep.subr.mxu0 0.0
      %380 = vmatpush1.msra.mxu0 0.0
      %381 = vmatprep.subr.mxu0 0.0
      %382 = vmatpush1.msra.mxu0 0.0
      %383 = vmatprep.subr.mxu0 0.0
      %384 = vmatpush1.msra.mxu0 0.0
      %385 = vmatprep.subr.mxu0 0.0
      %386 = vmatpush1.msra.mxu0 0.0
      %387 = vmatprep.subr.mxu0 0.0
      %388 = vmatpush1.msra.mxu0 0.0
      %389 = vmatprep.subr.mxu0 0.0
      %390 = vmatpush1.msra.mxu0 0.0
      %391 = vmatprep.mubr.f32.mxu0 0.0
      %392 = vmatmul.mubr.f32.gmra.mrb[0].mxu0 %v322
      %v393 = vpop.f32.mrb[0].mxu0
      %v394 = vadd.f32 0.0, %v393
      %v395 = vpop.f32.mrb[0].mxu0
      %396 = vmatprep.mubr.f32.mxu0 0.0
      %397 = vmatmul.mubr.f32.gmra.mrb[0].mxu0 %v325
      %v398 = vpop.f32.mrb[0].mxu0
      %v399 = vadd.f32 0.0, %v398
      %v400 = vpop.f32.mrb[0].mxu0
      %401 = vdwg.mxu0
      %402 = vxpose.xlu0.b32.start [1/16] %v394, 128
      %403 = vxpose.xlu0.b32.cont [2/16] %v399, 128
      %404 = vxpose.xlu0.b32.cont [3/16] 0.0, 128
      %405 = vxpose.xlu0.b32.cont [4/16] 0.0, 128
      %406 = vxpose.xlu0.b32.cont [5/16] 0.0, 128
      %407 = vxpose.xlu0.b32.cont [6/16] 0.0, 128
      %408 = vxpose.xlu0.b32.cont [7/16] 0.0, 128
      %409 = vxpose.xlu0.b32.cont [8/16] 0.0, 128
      %410 = vxpose.xlu0.b32.cont [9/16] 0.0, 128
      %411 = vxpose.xlu0.b32.cont [10/16] 0.0, 128
      %412 = vxpose.xlu0.b32.cont [11/16] 0.0, 128
      %413 = vxpose.xlu0.b32.cont [12/16] 0.0, 128
      %414 = vxpose.xlu0.b32.cont [13/16] 0.0, 128
      %415 = vxpose.xlu0.b32.cont [14/16] 0.0, 128
      %416 = vxpose.xlu0.b32.cont [15/16] 0.0, 128
      %417 = vxpose.xlu0.b32.end [16/16] 0.0, 128
      %v418 = vpop.trf.xlu0
      %v419 = vpop.trf.xlu0
      %v420 = vpop.trf.xlu0
      %v421 = vpop.trf.xlu0
      %v422 = vpop.trf.xlu0
      %v423 = vpop.trf.xlu0
      %v424 = vpop.trf.xlu0
      %v425 = vpop.trf.xlu0
      %v426 = vpop.trf.xlu0
      %v427 = vpop.trf.xlu0
      %v428 = vpop.trf.xlu0
      %v429 = vpop.trf.xlu0
      %v430 = vpop.trf.xlu0
      %v431 = vpop.trf.xlu0
      %v432 = vpop.trf.xlu0
      %v433 = vpop.trf.xlu0
      %435 = vset.pattern.permute.xlu0 2
      %436 = vperm.xlu0 %435, %v394
      %v437 = vpop.permute.xlu0 %436
      %440 = vset.pattern.permute.xlu0 2
      %441 = vperm.xlu0 %440, %v399
      %v442 = vpop.permute.xlu0 %441
      %v444 = vlaneseq
      %v445 = vshrl.u32 %v444, 7
      %v446 = vsub.s32 0, %v445
      %v447 = vrot.slane %v418, %v446
      %v448 = vadd.f32 %v437, %v447
      %v449 = vadd.f32 %v442, %v447
      %450 = vset.pattern.permute.xlu0 3
      %451 = vperm.xlu0 %450, %v394
      %v452 = vpop.permute.xlu0 %451
      %454 = vset.pattern.permute.xlu0 3
      %455 = vperm.xlu0 %454, %v399
      %v456 = vpop.permute.xlu0 %455
      %v458 = vlaneseq
      %v459 = vshrl.u32 %v458, 7
      %v460 = vsub.s32 1, %v459
      %v461 = vrot.slane %v418, %v460
      %v462 = vadd.f32 %v452, %v461
      %v463 = vadd.f32 %v456, %v461
      %vm464 = vcmp.ge.f32.partialorder %v448, 0.0
      %vm465 = vcmp.ge.f32.partialorder %v449, 0.0
      %vm466 = vcmp.ge.f32.partialorder %v462, 0.0
      %vm467 = vcmp.ge.f32.partialorder %v463, 0.0
      %v468 = vmul.f32 %v448, 0.2
      %v469 = vmul.f32 %v449, 0.2
      %v470 = vmul.f32 %v462, 0.2
      %v471 = vmul.f32 %v463, 0.2
      %v472 = vsel %vm464, %v448, %v468
      %v473 = vsel %vm465, %v449, %v469
      %v474 = vsel %vm466, %v462, %v470
      %v475 = vsel %vm467, %v463, %v471
      %vm476 = vcmp.gt.f32.partialorder %v193, 0.0
      %vm477 = vcmp.gt.f32.partialorder %v194, 0.0
      %v478 = vsel %vm476, 1, 0
      %v479 = vsel %vm477, 1, 0
      %vm480 = vcmp.eq.s32.totalorder %v478, 1
      %vm481 = vcmp.eq.s32.totalorder %v479, 1
      %v482 = vsel %vm480, %v472, -1e+09
      %v483 = vsel %vm481, %v473, -1e+09
      %v484 = vsel %vm480, %v474, -1e+09
      %v485 = vsel %vm481, %v475, -1e+09
      %vm486 = vcmask 130048
      %v487 = vsel %vm486, %v482, -inf
      %488 = vmax.xlane.f32.xlu0 %v487
      %v489 = vpop.xlane.xlu0 %488
      %v490 = vsel %vm486, %v483, -inf
      %491 = vmax.xlane.f32.xlu0 %v490
      %v492 = vpop.xlane.xlu0 %491
      %v493 = vsel %vm486, %v484, -inf
      %494 = vmax.xlane.f32.xlu0 %v493
      %v495 = vpop.xlane.xlu0 %494
      %v496 = vsel %vm486, %v485, -inf
      %497 = vmax.xlane.f32.xlu0 %v496
      %v498 = vpop.xlane.xlu0 %497
      %v499 = vsub.f32 %v482, %v489
      %v500 = vsub.f32 %v483, %v492
      %v501 = vsub.f32 %v484, %v495
      %v502 = vsub.f32 %v485, %v498
      %v503 = vmul.f32 %v499, 1.442695
      %v504 = vpow.pop %v503
      %v505 = vmul.f32 %v500, 1.442695
      %v506 = vpow.pop %v505
      %v507 = vmul.f32 %v501, 1.442695
      %v508 = vpow.pop %v507
      %v509 = vmul.f32 %v502, 1.442695
      %v510 = vpow.pop %v509
      %v511 = vsel %vm486, %v504, 0.0
      %512 = vadd.xlane.f32.xlu0 %v511
      %v513 = vpop.xlane.xlu0 %512
      %v514 = vsel %vm486, %v506, 0.0
      %515 = vadd.xlane.f32.xlu0 %v514
      %v516 = vpop.xlane.xlu0 %515
      %v517 = vsel %vm486, %v508, 0.0
      %518 = vadd.xlane.f32.xlu0 %v517
      %v519 = vpop.xlane.xlu0 %518
      %v520 = vsel %vm486, %v510, 0.0
      %521 = vadd.xlane.f32.xlu0 %v520
      %v522 = vpop.xlane.xlu0 %521
      %v523 = vrcp.pop %v513
      %v524 = vrcp.pop %v516
      %v525 = vrcp.pop %v519
      %v526 = vrcp.pop %v522
      %v527 = vmul.f32 %v504, %v523
      %v528 = vmul.f32 %v506, %v524
      %v529 = vmul.f32 %v508, %v525
      %v530 = vmul.f32 %v510, %v526
      %531 = vrot.lane.b32.xlu0 %v312, 96
      %v532 = vpop.permute.xlu0 %531
      %533 = vrot.lane.b32.xlu0 %v317, 96
      %v534 = vpop.permute.xlu0 %533
      %v538 = vsel %vm486, %v527, 0
      %v541 = vsel %vm486, %v528, 0
      %543 = vmatprep.subr.mxu0 0.0
      %544 = vmatpush1.msra.mxu0 %v312
      %545 = vmatprep.subr.mxu0 0.0
      %546 = vmatpush1.msra.mxu0 %v317
      %547 = vmatprep.subr.mxu0 0.0
      %548 = vmatpush1.msra.mxu0 0.0
      %549 = vmatprep.subr.mxu0 0.0
      %550 = vmatpush1.msra.mxu0 0.0
      %551 = vmatprep.subr.mxu0 0.0
      %552 = vmatpush1.msra.mxu0 0.0
      %553 = vmatprep.subr.mxu0 0.0
      %554 = vmatpush1.msra.mxu0 0.0
      %555 = vmatprep.subr.mxu0 0.0
      %556 = vmatpush1.msra.mxu0 0.0
      %557 = vmatprep.subr.mxu0 0.0
      %558 = vmatpush1.msra.mxu0 0.0
      %559 = vmatprep.subr.mxu0 0.0
      %560 = vmatpush1.msra.mxu0 0.0
      %561 = vmatprep.subr.mxu0 0.0
      %562 = vmatpush1.msra.mxu0 0.0
      %563 = vmatprep.subr.mxu0 0.0
      %564 = vmatpush1.msra.mxu0 0.0
      %565 = vmatprep.subr.mxu0 0.0
      %566 = vmatpush1.msra.mxu0 0.0
      %567 = vmatprep.subr.mxu0 0.0
      %568 = vmatpush1.msra.mxu0 0.0
      %569 = vmatprep.subr.mxu0 0.0
      %570 = vmatpush1.msra.mxu0 0.0
      %571 = vmatprep.subr.mxu0 0.0
      %572 = vmatpush1.msra.mxu0 0.0
      %573 = vmatprep.subr.mxu0 0.0
      %574 = vmatpush1.msra.mxu0 0.0
      %575 = vmatprep.subr.mxu0 0.0
      %576 = vmatpush1.msra.mxu0 0.0
      %577 = vmatprep.subr.mxu0 0.0
      %578 = vmatpush1.msra.mxu0 0.0
      %579 = vmatprep.subr.mxu0 0.0
      %580 = vmatpush1.msra.mxu0 0.0
      %581 = vmatprep.subr.mxu0 0.0
      %582 = vmatpush1.msra.mxu0 0.0
      %583 = vmatprep.subr.mxu0 0.0
      %584 = vmatpush1.msra.mxu0 0.0
      %585 = vmatprep.subr.mxu0 0.0
      %586 = vmatpush1.msra.mxu0 0.0
      %587 = vmatprep.subr.mxu0 0.0
      %588 = vmatpush1.msra.mxu0 0.0
      %589 = vmatprep.subr.mxu0 0.0
      %590 = vmatpush1.msra.mxu0 0.0
      %591 = vmatprep.subr.mxu0 0.0
      %592 = vmatpush1.msra.mxu0 0.0
      %593 = vmatprep.subr.mxu0 0.0
      %594 = vmatpush1.msra.mxu0 0.0
      %595 = vmatprep.subr.mxu0 0.0
      %596 = vmatpush1.msra.mxu0 0.0
      %597 = vmatprep.subr.mxu0 0.0
      %598 = vmatpush1.msra.mxu0 0.0
      %599 = vmatprep.subr.mxu0 0.0
      %600 = vmatpush1.msra.mxu0 0.0
      %601 = vmatprep.subr.mxu0 0.0
      %602 = vmatpush1.msra.mxu0 0.0
      %603 = vmatprep.subr.mxu0 0.0
      %604 = vmatpush1.msra.mxu0 0.0
      %605 = vmatprep.subr.mxu0 0.0
      %606 = vmatpush1.msra.mxu0 0.0
      %607 = vmatprep.mubr.f32.mxu0 0.0
      %608 = vmatmul.mubr.f32.gmra.mrb[0].mxu0 %v538
      %v609 = vpop.f32.mrb[0].mxu0
      %v610 = vadd.f32 0.0, %v609
      %v611 = vpop.f32.mrb[0].mxu0
      %612 = vmatprep.mubr.f32.mxu0 0.0
      %613 = vmatmul.mubr.f32.gmra.mrb[0].mxu0 %v541
      %v614 = vpop.f32.mrb[0].mxu0
      %v615 = vadd.f32 0.0, %v614
      %v616 = vpop.f32.mrb[0].mxu0
      %617 = vdwg.mxu0
      %v619 = vsel %vm486, %v529, 0
      %v622 = vsel %vm486, %v530, 0
      %624 = vmatprep.subr.mxu0 0.0
      %625 = vmatpush1.msra.mxu0 %v532
      %626 = vmatprep.subr.mxu0 0.0
      %627 = vmatpush1.msra.mxu0 %v534
      %628 = vmatprep.subr.mxu0 0.0
      %629 = vmatpush1.msra.mxu0 0.0
      %630 = vmatprep.subr.mxu0 0.0
      %631 = vmatpush1.msra.mxu0 0.0
      %632 = vmatprep.subr.mxu0 0.0
      %633 = vmatpush1.msra.mxu0 0.0
      %634 = vmatprep.subr.mxu0 0.0
      %635 = vmatpush1.msra.mxu0 0.0
      %636 = vmatprep.subr.mxu0 0.0
      %637 = vmatpush1.msra.mxu0 0.0
      %638 = vmatprep.subr.mxu0 0.0
      %639 = vmatpush1.msra.mxu0 0.0
      %640 = vmatprep.subr.mxu0 0.0
      %641 = vmatpush1.msra.mxu0 0.0
      %642 = vmatprep.subr.mxu0 0.0
      %643 = vmatpush1.msra.mxu0 0.0
      %644 = vmatprep.subr.mxu0 0.0
      %645 = vmatpush1.msra.mxu0 0.0
      %646 = vmatprep.subr.mxu0 0.0
      %647 = vmatpush1.msra.mxu0 0.0
      %648 = vmatprep.subr.mxu0 0.0
      %649 = vmatpush1.msra.mxu0 0.0
      %650 = vmatprep.subr.mxu0 0.0
      %651 = vmatpush1.msra.mxu0 0.0
      %652 = vmatprep.subr.mxu0 0.0
      %653 = vmatpush1.msra.mxu0 0.0
      %654 = vmatprep.subr.mxu0 0.0
      %655 = vmatpush1.msra.mxu0 0.0
      %656 = vmatprep.subr.mxu0 0.0
      %657 = vmatpush1.msra.mxu0 0.0
      %658 = vmatprep.subr.mxu0 0.0
      %659 = vmatpush1.msra.mxu0 0.0
      %660 = vmatprep.subr.mxu0 0.0
      %661 = vmatpush1.msra.mxu0 0.0
      %662 = vmatprep.subr.mxu0 0.0
      %663 = vmatpush1.msra.mxu0 0.0
      %664 = vmatprep.subr.mxu0 0.0
      %665 = vmatpush1.msra.mxu0 0.0
      %666 = vmatprep.subr.mxu0 0.0
      %667 = vmatpush1.msra.mxu0 0.0
      %668 = vmatprep.subr.mxu0 0.0
      %669 = vmatpush1.msra.mxu0 0.0
      %670 = vmatprep.subr.mxu0 0.0
      %671 = vmatpush1.msra.mxu0 0.0
      %672 = vmatprep.subr.mxu0 0.0
      %673 = vmatpush1.msra.mxu0 0.0
      %674 = vmatprep.subr.mxu0 0.0
      %675 = vmatpush1.msra.mxu0 0.0
      %676 = vmatprep.subr.mxu0 0.0
      %677 = vmatpush1.msra.mxu0 0.0
      %678 = vmatprep.subr.mxu0 0.0
      %679 = vmatpush1.msra.mxu0 0.0
      %680 = vmatprep.subr.mxu0 0.0
      %681 = vmatpush1.msra.mxu0 0.0
      %682 = vmatprep.subr.mxu0 0.0
      %683 = vmatpush1.msra.mxu0 0.0
      %684 = vmatprep.subr.mxu0 0.0
      %685 = vmatpush1.msra.mxu0 0.0
      %686 = vmatprep.subr.mxu0 0.0
      %687 = vmatpush1.msra.mxu0 0.0
      %688 = vmatprep.mubr.f32.mxu0 0.0
      %689 = vmatmul.mubr.f32.gmra.mrb[0].mxu0 %v619
      %v690 = vpop.f32.mrb[0].mxu0
      %v691 = vadd.f32 0.0, %v690
      %v692 = vpop.f32.mrb[0].mxu0
      %693 = vmatprep.mubr.f32.mxu0 0.0
      %694 = vmatmul.mubr.f32.gmra.mrb[0].mxu0 %v622
      %v695 = vpop.f32.mrb[0].mxu0
      %v696 = vadd.f32 0.0, %v695
      %v697 = vpop.f32.mrb[0].mxu0
      %698 = vdwg.mxu0
      %701 = vrot.lane.b32.xlu0 %v691, 32
      %v702 = vpop.permute.xlu0 %701
      %703 = vrot.lane.b32.xlu0 %v696, 32
      %v704 = vpop.permute.xlu0 %703
      %vm707 = vcmask 261120
      %v708 = vsel %vm707, %v610, %v702
      %v709 = vsel %vm707, %v615, %v704
      %v710 = vlaneseq
      %v711 = vshrl.u32 %v710, 7
      %v712 = vsub.s32 0, %v711
      %v713 = vrot.slane %v223, %v712
      %v714 = vadd.f32 %v708, %v713
      %v715 = vadd.f32 %v709, %v713
      %v716 = vsel %vm320, %v714, 0.0
      %v717 = vsel %vm320, %v715, 0.0
      %v718 = vadd.f32 %v716, %v717
      %v719 = vrot.slane %v718, 4
      %v720 = vadd.f32 %v718, %v719
      %v721 = vrot.slane %v720, 2
      %v722 = vadd.f32 %v720, %v721
      %v723 = vrot.slane %v722, 1
      %v724 = vadd.f32 %v722, %v723
      %v725 = vrcp.pop 16.0
      %v726 = vmul.f32 %v724, %v725
      %v727 = vsub.f32 %v714, %v726
      %v728 = vsub.f32 %v715, %v726
      %v729 = vmul.f32 %v727, %v727
      %v730 = vmul.f32 %v728, %v728
      %v731 = vsel %vm320, %v729, 0.0
      %v732 = vsel %vm320, %v730, 0.0
      %v733 = vadd.f32 %v731, %v732
      %v734 = vrot.slane %v733, 4
      %v735 = vadd.f32 %v733, %v734
      %v736 = vrot.slane %v735, 2
      %v737 = vadd.f32 %v735, %v736
      %v738 = vrot.slane %v737, 1
      %v739 = vadd.f32 %v737, %v738
      %v740 = vmul.f32 %v739, %v725
      %v741 = vadd.f32 %v740, 1e-05
      %v742 = vrsqrt.pop %v741
      %v743 = vmul.f32 %v727, %v742
      %v744 = vmul.f32 %v728, %v742
      %v745 = vlaneseq
      %v746 = vshrl.u32 %v745, 7
      %v747 = vsub.s32 0, %v746
      %v748 = vrot.slane %v228, %v747
      %v749 = vmul.f32 %v743, %v748
      %v750 = vmul.f32 %v744, %v748
      %v751 = vlaneseq
      %v752 = vshrl.u32 %v751, 7
      %v753 = vsub.s32 0, %v752
      %v754 = vrot.slane %v229, %v753
      %v755 = vadd.f32 %v749, %v754
      %v756 = vadd.f32 %v750, %v754
      %vm757 = vcmp.ge.f32.partialorder %v755, 0.0
      %vm758 = vcmp.ge.f32.partialorder %v756, 0.0
      %v759 = vmul.f32 %v755, 0.1
      %v760 = vmul.f32 %v756, 0.1
      %v761 = vsel %vm757, %v755, %v759
      %v762 = vsel %vm758, %v756, %v760
      %v763 = vlaneseq
      %v764 = vshrl.u32 %v763, 7
      %v765 = vsub.s32 0, %v764
      %v766 = vrot.slane %v224, %v765
      %v768 = vsel %vm320, %v761, 0
      %v771 = vsel %vm320, %v762, 0
      %773 = vmatprep.subr.mxu0 0.0
      %774 = vmatpush1.msra.mxu0 %v212
      %775 = vmatprep.subr.mxu0 0.0
      %776 = vmatpush1.msra.mxu0 %v213
      %777 = vmatprep.subr.mxu0 0.0
      %778 = vmatpush1.msra.mxu0 %v214
      %779 = vmatprep.subr.mxu0 0.0
      %780 = vmatpush1.msra.mxu0 %v215
      %781 = vmatprep.subr.mxu0 0.0
      %782 = vmatpush1.msra.mxu0 %v216
      %783 = vmatprep.subr.mxu0 0.0
      %784 = vmatpush1.msra.mxu0 %v217
      %785 = vmatprep.subr.mxu0 0.0
      %786 = vmatpush1.msra.mxu0 %v218
      %787 = vmatprep.subr.mxu0 0.0
      %788 = vmatpush1.msra.mxu0 %v219
      %789 = vmatprep.subr.mxu0 0.0
      %790 = vmatpush1.msra.mxu0 0.0
      %791 = vmatprep.subr.mxu0 0.0
      %792 = vmatpush1.msra.mxu0 0.0
      %793 = vmatprep.subr.mxu0 0.0
      %794 = vmatpush1.msra.mxu0 0.0
      %795 = vmatprep.subr.mxu0 0.0
      %796 = vmatpush1.msra.mxu0 0.0
      %797 = vmatprep.subr.mxu0 0.0
      %798 = vmatpush1.msra.mxu0 0.0
      %799 = vmatprep.subr.mxu0 0.0
      %800 = vmatpush1.msra.mxu0 0.0
      %801 = vmatprep.subr.mxu0 0.0
      %802 = vmatpush1.msra.mxu0 0.0
      %803 = vmatprep.subr.mxu0 0.0
      %804 = vmatpush1.msra.mxu0 0.0
      %805 = vmatprep.subr.mxu0 0.0
      %806 = vmatpush1.msra.mxu0 0.0
      %807 = vmatprep.subr.mxu0 0.0
      %808 = vmatpush1.msra.mxu0 0.0
      %809 = vmatprep.subr.mxu0 0.0
      %810 = vmatpush1.msra.mxu0 0.0
      %811 = vmatprep.subr.mxu0 0.0
      %812 = vmatpush1.msra.mxu0 0.0
      %813 = vmatprep.subr.mxu0 0.0
      %814 = vmatpush1.msra.mxu0 0.0
      %815 = vmatprep.subr.mxu0 0.0
      %816 = vmatpush1.msra.mxu0 0.0
      %817 = vmatprep.subr.mxu0 0.0
      %818 = vmatpush1.msra.mxu0 0.0
      %819 = vmatprep.subr.mxu0 0.0
      %820 = vmatpush1.msra.mxu0 0.0
      %821 = vmatprep.subr.mxu0 0.0
      %822 = vmatpush1.msra.mxu0 0.0
      %823 = vmatprep.subr.mxu0 0.0
      %824 = vmatpush1.msra.mxu0 0.0
      %825 = vmatprep.subr.mxu0 0.0
      %826 = vmatpush1.msra.mxu0 0.0
      %827 = vmatprep.subr.mxu0 0.0
      %828 = vmatpush1.msra.mxu0 0.0
      %829 = vmatprep.subr.mxu0 0.0
      %830 = vmatpush1.msra.mxu0 0.0
      %831 = vmatprep.subr.mxu0 0.0
      %832 = vmatpush1.msra.mxu0 0.0
      %833 = vmatprep.subr.mxu0 0.0
      %834 = vmatpush1.msra.mxu0 0.0
      %835 = vmatprep.subr.mxu0 0.0
      %836 = vmatpush1.msra.mxu0 0.0
      %837 = vmatprep.mubr.f32.mxu0 0.0
      %838 = vmatmul.mubr.f32.gmra.mrb[0].mxu0 %v768
      %v839 = vpop.f32.mrb[0].mxu0
      %v840 = vadd.f32 %v766, %v839
      %v841 = vpop.f32.mrb[0].mxu0
      %842 = vmatprep.mubr.f32.mxu0 0.0
      %843 = vmatmul.mubr.f32.gmra.mrb[0].mxu0 %v771
      %v844 = vpop.f32.mrb[0].mxu0
      %v845 = vadd.f32 %v766, %v844
      %v846 = vpop.f32.mrb[0].mxu0
      %847 = vdwg.mxu0
      %v848 = vsel %vm707, %v840, 0.0
      %v849 = vsel %vm707, %v845, 0.0
      %v850 = vadd.f32 %v848, %v849
      %v851 = vrot.slane %v850, 4
      %v852 = vadd.f32 %v850, %v851
      %v853 = vrot.slane %v852, 2
      %v854 = vadd.f32 %v852, %v853
      %v855 = vrot.slane %v854, 1
      %v856 = vadd.f32 %v854, %v855
      %v857 = vmul.f32 %v856, %v725
      %v858 = vsub.f32 %v840, %v857
      %v859 = vsub.f32 %v845, %v857
      %v860 = vmul.f32 %v858, %v858
      %v861 = vmul.f32 %v859, %v859
      %v862 = vsel %vm707, %v860, 0.0
      %v863 = vsel %vm707, %v861, 0.0
      %v864 = vadd.f32 %v862, %v863
      %v865 = vrot.slane %v864, 4
      %v866 = vadd.f32 %v864, %v865
      %v867 = vrot.slane %v866, 2
      %v868 = vadd.f32 %v866, %v867
      %v869 = vrot.slane %v868, 1
      %v870 = vadd.f32 %v868, %v869
      %v871 = vmul.f32 %v870, %v725
      %v872 = vadd.f32 %v871, 1e-05
      %v873 = vrsqrt.pop %v872
      %v874 = vmul.f32 %v858, %v873
      %v875 = vmul.f32 %v859, %v873
      %v876 = vlaneseq
      %v877 = vshrl.u32 %v876, 7
      %v878 = vsub.s32 0, %v877
      %v879 = vrot.slane %v230, %v878
      %v880 = vmul.f32 %v874, %v879
      %v881 = vmul.f32 %v875, %v879
      %v882 = vlaneseq
      %v883 = vshrl.u32 %v882, 7
      %v884 = vsub.s32 0, %v883
      %v885 = vrot.slane %v231, %v884
      %v886 = vadd.f32 %v880, %v885
      %v887 = vadd.f32 %v881, %v885
      %vm888 = vcmp.ge.f32.partialorder %v886, 0.0
      %vm889 = vcmp.ge.f32.partialorder %v887, 0.0
      %v890 = vmul.f32 %v886, 0.1
      %v891 = vmul.f32 %v887, 0.1
      %v892 = vsel %vm888, %v886, %v890
      %v893 = vsel %vm889, %v887, %v891
      %v894 = vlaneseq
      %v895 = vshrl.u32 %v894, 7
      %v896 = vsub.s32 0, %v895
      %v897 = vrot.slane %v220, %v896
      %v898 = vmul.f32 %v892, %v897
      %v899 = vmul.f32 %v893, %v897
      %v900 = vsel %vm707, %v898, 0.0
      %901 = vadd.xlane.f32.xlu0 %v900
      %v902 = vpop.xlane.xlu0 %901
      %v903 = vsel %vm707, %v899, 0.0
      %904 = vadd.xlane.f32.xlu0 %v903
      %v905 = vpop.xlane.xlu0 %904
      %v906 = vlaneseq
      %v907 = vshrl.u32 %v906, 7
      %v908 = vsub.s32 1, %v907
      %v909 = vrot.slane %v220, %v908
      %v910 = vmul.f32 %v892, %v909
      %v911 = vmul.f32 %v893, %v909
      %v912 = vsel %vm707, %v910, 0.0
      %913 = vadd.xlane.f32.xlu0 %v912
      %v914 = vpop.xlane.xlu0 %913
      %v915 = vsel %vm707, %v911, 0.0
      %916 = vadd.xlane.f32.xlu0 %v915
      %v917 = vpop.xlane.xlu0 %916
      %v918 = vlaneseq
      %v919 = vshrl.u32 %v918, 7
      %v920 = vsub.s32 2, %v919
      %v921 = vrot.slane %v220, %v920
      %v922 = vmul.f32 %v892, %v921
      %v923 = vmul.f32 %v893, %v921
      %v924 = vsel %vm707, %v922, 0.0
      %925 = vadd.xlane.f32.xlu0 %v924
      %v926 = vpop.xlane.xlu0 %925
      %v927 = vsel %vm707, %v923, 0.0
      %928 = vadd.xlane.f32.xlu0 %v927
      %v929 = vpop.xlane.xlu0 %928
      %v930 = vlaneseq
      %v931 = vshrl.u32 %v930, 7
      %v932 = vsub.s32 3, %v931
      %v933 = vrot.slane %v220, %v932
      %v934 = vmul.f32 %v892, %v933
      %v935 = vmul.f32 %v893, %v933
      %v936 = vsel %vm707, %v934, 0.0
      %937 = vadd.xlane.f32.xlu0 %v936
      %v938 = vpop.xlane.xlu0 %937
      %v939 = vsel %vm707, %v935, 0.0
      %940 = vadd.xlane.f32.xlu0 %v939
      %v941 = vpop.xlane.xlu0 %940
      %v942 = vlaneseq
      %v943 = vshrl.u32 %v942, 7
      %v944 = vsub.s32 4, %v943
      %v945 = vrot.slane %v220, %v944
      %v946 = vmul.f32 %v892, %v945
      %v947 = vmul.f32 %v893, %v945
      %v948 = vsel %vm707, %v946, 0.0
      %949 = vadd.xlane.f32.xlu0 %v948
      %v950 = vpop.xlane.xlu0 %949
      %v951 = vsel %vm707, %v947, 0.0
      %952 = vadd.xlane.f32.xlu0 %v951
      %v953 = vpop.xlane.xlu0 %952
      %v954 = vlaneseq
      %v955 = vshrl.u32 %v954, 7
      %v956 = vsub.s32 5, %v955
      %v957 = vrot.slane %v220, %v956
      %v958 = vmul.f32 %v892, %v957
      %v959 = vmul.f32 %v893, %v957
      %v960 = vsel %vm707, %v958, 0.0
      %961 = vadd.xlane.f32.xlu0 %v960
      %v962 = vpop.xlane.xlu0 %961
      %v963 = vsel %vm707, %v959, 0.0
      %964 = vadd.xlane.f32.xlu0 %v963
      %v965 = vpop.xlane.xlu0 %964
      %v966 = vlaneseq
      %v967 = vshrl.u32 %v966, 7
      %v968 = vsub.s32 6, %v967
      %v969 = vrot.slane %v220, %v968
      %v970 = vmul.f32 %v892, %v969
      %v971 = vmul.f32 %v893, %v969
      %v972 = vsel %vm707, %v970, 0.0
      %973 = vadd.xlane.f32.xlu0 %v972
      %v974 = vpop.xlane.xlu0 %973
      %v975 = vsel %vm707, %v971, 0.0
      %976 = vadd.xlane.f32.xlu0 %v975
      %v977 = vpop.xlane.xlu0 %976
      %v978 = vlaneseq
      %v979 = vshrl.u32 %v978, 7
      %v980 = vsub.s32 7, %v979
      %v981 = vrot.slane %v220, %v980
      %v982 = vmul.f32 %v892, %v981
      %v983 = vmul.f32 %v893, %v981
      %v984 = vsel %vm707, %v982, 0.0
      %985 = vadd.xlane.f32.xlu0 %v984
      %v986 = vpop.xlane.xlu0 %985
      %v987 = vsel %vm707, %v983, 0.0
      %988 = vadd.xlane.f32.xlu0 %v987
      %v989 = vpop.xlane.xlu0 %988
      %vm990 = vcmask 7168
      %v991 = vsel %vm990, %v902, %v914
      %v992 = vsel %vm990, %v905, %v917
      %vm993 = vcmask 15360
      %v994 = vsel %vm993, %v991, %v926
      %v995 = vsel %vm993, %v992, %v929
      %vm996 = vcmask 23552
      %v997 = vsel %vm996, %v994, %v938
      %v998 = vsel %vm996, %v995, %v941
      %vm999 = vcmask 31744
      %v1000 = vsel %vm999, %v997, %v950
      %v1001 = vsel %vm999, %v998, %v953
      %vm1002 = vcmask 39936
      %v1003 = vsel %vm1002, %v1000, %v962
      %v1004 = vsel %vm1002, %v1001, %v965
      %vm1005 = vcmask 48128
      %v1006 = vsel %vm1005, %v1003, %v974
      %v1007 = vsel %vm1005, %v1004, %v977
      %vm1008 = vcmask 56320
      %v1009 = vsel %vm1008, %v1006, %v986
      %v1010 = vsel %vm1008, %v1007, %v989
      %v1011 = vlaneseq
      %v1012 = vshrl.u32 %v1011, 7
      %v1013 = vsub.s32 0, %v1012
      %v1014 = vrot.slane %v225, %v1013
      %v1015 = vadd.f32 %v1009, %v1014
      %v1016 = vadd.f32 %v1010, %v1014
      %vm1017 = vcmask 64512
      %v1018 = vsel %vm1017, %v1015, 0.0
      %v1019 = vsel %vm1017, %v1016, 0.0
      %v1020 = vadd.f32 %v1018, %v1019
      %v1021 = vrot.slane %v1020, 4
      %v1022 = vadd.f32 %v1020, %v1021
      %v1023 = vrot.slane %v1022, 2
      %v1024 = vadd.f32 %v1022, %v1023
      %v1025 = vrot.slane %v1024, 1
      %v1026 = vadd.f32 %v1024, %v1025
      %v1027 = vmul.f32 %v1026, %v725
      %v1028 = vsub.f32 %v1015, %v1027
      %v1029 = vsub.f32 %v1016, %v1027
      %v1030 = vmul.f32 %v1028, %v1028
      %v1031 = vmul.f32 %v1029, %v1029
      %v1032 = vsel %vm1017, %v1030, 0.0
      %v1033 = vsel %vm1017, %v1031, 0.0
      %v1034 = vadd.f32 %v1032, %v1033
      %v1035 = vrot.slane %v1034, 4
      %v1036 = vadd.f32 %v1034, %v1035
      %v1037 = vrot.slane %v1036, 2
      %v1038 = vadd.f32 %v1036, %v1037
      %v1039 = vrot.slane %v1038, 1
      %v1040 = vadd.f32 %v1038, %v1039
      %v1041 = vmul.f32 %v1040, %v725
      %v1042 = vadd.f32 %v1041, 1e-05
      %v1043 = vrsqrt.pop %v1042
      %v1044 = vmul.f32 %v1028, %v1043
      %v1045 = vmul.f32 %v1029, %v1043
      %v1046 = vlaneseq
      %v1047 = vshrl.u32 %v1046, 7
      %v1048 = vsub.s32 0, %v1047
      %v1049 = vrot.slane %v232, %v1048
      %v1050 = vmul.f32 %v1044, %v1049
      %v1051 = vmul.f32 %v1045, %v1049
      %v1052 = vlaneseq
      %v1053 = vshrl.u32 %v1052, 7
      %v1054 = vsub.s32 0, %v1053
      %v1055 = vrot.slane %v233, %v1054
      %v1056 = vadd.f32 %v1050, %v1055
      %v1057 = vadd.f32 %v1051, %v1055
      %vm1058 = vcmp.ge.f32.partialorder %v1056, 0.0
      %vm1059 = vcmp.ge.f32.partialorder %v1057, 0.0
      %v1060 = vmul.f32 %v1056, 0.1
      %v1061 = vmul.f32 %v1057, 0.1
      %v1062 = vsel %vm1058, %v1056, %v1060
      %v1063 = vsel %vm1059, %v1057, %v1061
      %v1064 = vlaneseq
      %v1065 = vshrl.u32 %v1064, 7
      %v1066 = vsub.s32 0, %v1065
      %v1067 = vrot.slane %v221, %v1066
      %v1068 = vmul.f32 %v1062, %v1067
      %v1069 = vmul.f32 %v1063, %v1067
      %v1070 = vsel %vm1017, %v1068, 0.0
      %1071 = vadd.xlane.f32.xlu0 %v1070
      %v1072 = vpop.xlane.xlu0 %1071
      %v1073 = vsel %vm1017, %v1069, 0.0
      %1074 = vadd.xlane.f32.xlu0 %v1073
      %v1075 = vpop.xlane.xlu0 %1074
      %v1076 = vlaneseq
      %v1077 = vshrl.u32 %v1076, 7
      %v1078 = vsub.s32 1, %v1077
      %v1079 = vrot.slane %v221, %v1078
      %v1080 = vmul.f32 %v1062, %v1079
      %v1081 = vmul.f32 %v1063, %v1079
      %v1082 = vsel %vm1017, %v1080, 0.0
      %1083 = vadd.xlane.f32.xlu0 %v1082
      %v1084 = vpop.xlane.xlu0 %1083
      %v1085 = vsel %vm1017, %v1081, 0.0
      %1086 = vadd.xlane.f32.xlu0 %v1085
      %v1087 = vpop.xlane.xlu0 %1086
      %v1088 = vlaneseq
      %v1089 = vshrl.u32 %v1088, 7
      %v1090 = vsub.s32 2, %v1089
      %v1091 = vrot.slane %v221, %v1090
      %v1092 = vmul.f32 %v1062, %v1091
      %v1093 = vmul.f32 %v1063, %v1091
      %v1094 = vsel %vm1017, %v1092, 0.0
      %1095 = vadd.xlane.f32.xlu0 %v1094
      %v1096 = vpop.xlane.xlu0 %1095
      %v1097 = vsel %vm1017, %v1093, 0.0
      %1098 = vadd.xlane.f32.xlu0 %v1097
      %v1099 = vpop.xlane.xlu0 %1098
      %v1100 = vlaneseq
      %v1101 = vshrl.u32 %v1100, 7
      %v1102 = vsub.s32 3, %v1101
      %v1103 = vrot.slane %v221, %v1102
      %v1104 = vmul.f32 %v1062, %v1103
      %v1105 = vmul.f32 %v1063, %v1103
      %v1106 = vsel %vm1017, %v1104, 0.0
      %1107 = vadd.xlane.f32.xlu0 %v1106
      %v1108 = vpop.xlane.xlu0 %1107
      %v1109 = vsel %vm1017, %v1105, 0.0
      %1110 = vadd.xlane.f32.xlu0 %v1109
      %v1111 = vpop.xlane.xlu0 %1110
      %v1112 = vsel %vm990, %v1072, %v1084
      %v1113 = vsel %vm990, %v1075, %v1087
      %v1114 = vsel %vm993, %v1112, %v1096
      %v1115 = vsel %vm993, %v1113, %v1099
      %v1116 = vsel %vm996, %v1114, %v1108
      %v1117 = vsel %vm996, %v1115, %v1111
      %v1118 = vlaneseq
      %v1119 = vshrl.u32 %v1118, 7
      %v1120 = vsub.s32 0, %v1119
      %v1121 = vrot.slane %v226, %v1120
      %v1122 = vadd.f32 %v1116, %v1121
      %v1123 = vadd.f32 %v1117, %v1121
      %v1124 = vsel %vm999, %v1122, 0.0
      %v1125 = vsel %vm999, %v1123, 0.0
      %v1126 = vadd.f32 %v1124, %v1125
      %v1127 = vrot.slane %v1126, 4
      %v1128 = vadd.f32 %v1126, %v1127
      %v1129 = vrot.slane %v1128, 2
      %v1130 = vadd.f32 %v1128, %v1129
      %v1131 = vrot.slane %v1130, 1
      %v1132 = vadd.f32 %v1130, %v1131
      %v1133 = vmul.f32 %v1132, %v725
      %v1134 = vsub.f32 %v1122, %v1133
      %v1135 = vsub.f32 %v1123, %v1133
      %v1136 = vmul.f32 %v1134, %v1134
      %v1137 = vmul.f32 %v1135, %v1135
      %v1138 = vsel %vm999, %v1136, 0.0
      %v1139 = vsel %vm999, %v1137, 0.0
      %v1140 = vadd.f32 %v1138, %v1139
      %v1141 = vrot.slane %v1140, 4
      %v1142 = vadd.f32 %v1140, %v1141
      %v1143 = vrot.slane %v1142, 2
      %v1144 = vadd.f32 %v1142, %v1143
      %v1145 = vrot.slane %v1144, 1
      %v1146 = vadd.f32 %v1144, %v1145
      %v1147 = vmul.f32 %v1146, %v725
      %v1148 = vadd.f32 %v1147, 1e-05
      %v1149 = vrsqrt.pop %v1148
      %v1150 = vmul.f32 %v1134, %v1149
      %v1151 = vmul.f32 %v1135, %v1149
      %v1152 = vlaneseq
      %v1153 = vshrl.u32 %v1152, 7
      %v1154 = vsub.s32 0, %v1153
      %v1155 = vrot.slane %v234, %v1154
      %v1156 = vmul.f32 %v1150, %v1155
      %v1157 = vmul.f32 %v1151, %v1155
      %v1158 = vlaneseq
      %v1159 = vshrl.u32 %v1158, 7
      %v1160 = vsub.s32 0, %v1159
      %v1161 = vrot.slane %v235, %v1160
      %v1162 = vadd.f32 %v1156, %v1161
      %v1163 = vadd.f32 %v1157, %v1161
      %vm1164 = vcmp.ge.f32.partialorder %v1162, 0.0
      %vm1165 = vcmp.ge.f32.partialorder %v1163, 0.0
      %v1166 = vmul.f32 %v1162, 0.1
      %v1167 = vmul.f32 %v1163, 0.1
      %v1168 = vsel %vm1164, %v1162, %v1166
      %v1169 = vsel %vm1165, %v1163, %v1167
      %v1170 = vlaneseq
      %v1171 = vshrl.u32 %v1170, 7
      %v1172 = vsub.s32 0, %v1171
      %v1173 = vrot.slane %v222, %v1172
      %v1174 = vmul.f32 %v1168, %v1173
      %v1175 = vmul.f32 %v1169, %v1173
      %v1176 = vsel %vm999, %v1174, 0.0
      %1177 = vadd.xlane.f32.xlu0 %v1176
      %v1178 = vpop.xlane.xlu0 %1177
      %v1179 = vsel %vm999, %v1175, 0.0
      %1180 = vadd.xlane.f32.xlu0 %v1179
      %v1181 = vpop.xlane.xlu0 %1180
      %v1182 = vlaneseq
      %v1183 = vshrl.u32 %v1182, 7
      %v1184 = vsub.s32 1, %v1183
      %v1185 = vrot.slane %v222, %v1184
      %v1186 = vmul.f32 %v1168, %v1185
      %v1187 = vmul.f32 %v1169, %v1185
      %v1188 = vsel %vm999, %v1186, 0.0
      %1189 = vadd.xlane.f32.xlu0 %v1188
      %v1190 = vpop.xlane.xlu0 %1189
      %v1191 = vsel %vm999, %v1187, 0.0
      %1192 = vadd.xlane.f32.xlu0 %v1191
      %v1193 = vpop.xlane.xlu0 %1192
      %v1194 = vsel %vm990, %v1178, %v1190
      %v1195 = vsel %vm990, %v1181, %v1193
      %v1196 = vlaneseq
      %v1197 = vshrl.u32 %v1196, 7
      %v1198 = vsub.s32 0, %v1197
      %v1199 = vrot.slane %v227, %v1198
      %v1200 = vadd.f32 %v1194, %v1199
      %v1201 = vadd.f32 %v1195, %v1199
      %v1202 = vsel %vm993, %v1200, 0.0
      %v1203 = vsel %vm993, %v1201, 0.0
      %v1204 = vadd.f32 %v1202, %v1203
      %v1205 = vrot.slane %v1204, 4
      %v1206 = vadd.f32 %v1204, %v1205
      %v1207 = vrot.slane %v1206, 2
      %v1208 = vadd.f32 %v1206, %v1207
      %v1209 = vrot.slane %v1208, 1
      %v1210 = vadd.f32 %v1208, %v1209
      %v1211 = vmul.f32 %v1210, %v725
      %v1212 = vsub.f32 %v1200, %v1211
      %v1213 = vsub.f32 %v1201, %v1211
      %v1214 = vmul.f32 %v1212, %v1212
      %v1215 = vmul.f32 %v1213, %v1213
      %v1216 = vsel %vm993, %v1214, 0.0
      %v1217 = vsel %vm993, %v1215, 0.0
      %v1218 = vadd.f32 %v1216, %v1217
      %v1219 = vrot.slane %v1218, 4
      %v1220 = vadd.f32 %v1218, %v1219
      %v1221 = vrot.slane %v1220, 2
      %v1222 = vadd.f32 %v1220, %v1221
      %v1223 = vrot.slane %v1222, 1
      %v1224 = vadd.f32 %v1222, %v1223
      %v1225 = vmul.f32 %v1224, %v725
      %v1226 = vadd.f32 %v1225, 1e-05
      %v1227 = vrsqrt.pop %v1226
      %v1228 = vmul.f32 %v1212, %v1227
      %v1229 = vmul.f32 %v1213, %v1227
      %v1230 = vlaneseq
      %v1231 = vshrl.u32 %v1230, 7
      %v1232 = vsub.s32 0, %v1231
      %v1233 = vrot.slane %v236, %v1232
      %v1234 = vmul.f32 %v1228, %v1233
      %v1235 = vmul.f32 %v1229, %v1233
      %v1236 = vlaneseq
      %v1237 = vshrl.u32 %v1236, 7
      %v1238 = vsub.s32 0, %v1237
      %v1239 = vrot.slane %v237, %v1238
      %v1240 = vadd.f32 %v1234, %v1239
      %v1241 = vadd.f32 %v1235, %v1239
      %vm1242 = vcmp.ge.f32.partialorder %v1240, 0.0
      %vm1243 = vcmp.ge.f32.partialorder %v1241, 0.0
      %v1244 = vmul.f32 %v1240, 0.1
      %v1245 = vmul.f32 %v1241, 0.1
      %v1246 = vsel %vm1242, %v1240, %v1244
      %v1247 = vsel %vm1243, %v1241, %v1245
      %v1248 = vsel %vm993, %v1246, -inf
      %1249 = vmax.xlane.f32.xlu0 %v1248
      %v1250 = vpop.xlane.xlu0 %1249
      %v1251 = vsel %vm993, %v1247, -inf
      %1252 = vmax.xlane.f32.xlu0 %v1251
      %v1253 = vpop.xlane.xlu0 %1252
      %v1254 = vsub.f32 %v1246, %v1250
      %v1255 = vsub.f32 %v1247, %v1253
      %v1256 = vmul.f32 %v1254, 1.442695
      %v1257 = vpow.pop %v1256
      %v1258 = vmul.f32 %v1255, 1.442695
      %v1259 = vpow.pop %v1258
      %v1260 = vsel %vm993, %v1257, 0.0
      %1261 = vadd.xlane.f32.xlu0 %v1260
      %v1262 = vpop.xlane.xlu0 %1261
      %v1263 = vsel %vm993, %v1259, 0.0
      %1264 = vadd.xlane.f32.xlu0 %v1263
      %v1265 = vpop.xlane.xlu0 %1264
      %v1266 = vrcp.pop %v1262
      %v1267 = vmul.f32 %v1257, %v1266
      %v1268 = vrcp.pop %v1265
      %v1269 = vmul.f32 %v1259, %v1268
      %1270 = vst.msk [vmem:[%s190] sm:$0xff] %vm993, %v1267
      %1271 = vst.msk [vmem:[%s190 + $0x8] sm:$0xff] %vm993, %v1269
      %p1272 = scmp.lt.s32.totalorder %s14, 3
      %s1273 = scalar_select %p1272, %s14, 3
      %s1274 = smul.addr %s1273, 2
      %s1275 = smul.addr %s1274, 8
      %s1276 = scalar_lea.vmem %s3, %s1275
      // Predicated region
      $region33: #{net_forward.1} parent=31 // pred_check
        %p1277 = pneg %p105
      $region34: #{net_forward.1} parent=31 // pred_check_branch
        %1279 = sbr.rel (%p1277) target = $region36
      $region35: #{net_forward.1} parent=31 // pred_region
        _
      $region36: #{net_forward.1} parent=31 // pred_fallthru
        _
    $region32: #{net_forward.1} parent=5 // pred_fallthru
      _
    %p1280 = scmp.le.s32.totalorder 2, %s9
    // Predicated region
    $region37: #{net_forward.1} parent=5 // pred_check
      %p1281 = pneg %p1280
    $region38: #{net_forward.1} parent=5 // pred_check_branch
      %1283 = sbr.rel (%p1281) target = $region40
    $region39: #{net_forward.1} parent=5 // pred_region
      %s1284 = ssub.s32 %s9, 2
      // Predicated region
      $region41: #{net_forward.1} parent=39 // pred_check
        %p1285 = pneg %p111
      $region42: #{net_forward.1} parent=39 // pred_check_branch
        %1287 = sbr.rel (%p1285) target = $region44
      $region43: #{net_forward.1} parent=39 // pred_region
        %p1288 = scmp.lt.s32.totalorder %s15, 3
        %s1289 = scalar_select %p1288, %s15, 3
        %s1290 = smul.addr %s1289, 2
        %s1291 = smul.addr %s1290, 8
        %s1292 = scalar_lea.vmem %s3, %s1291
      $region44: #{net_forward.1} parent=39 // pred_fallthru
        _
    $region40: #{net_forward.1} parent=5 // pred_fallthru
      _
  $region6: #{net_forward.1} parent=0 // loop_footer
    %s13 = sadd.s32 1, %s9
  $region7: #{net_forward.1} parent=0 // loop_footer_branch
    %8 = sbr.rel target = $region3
  $region8: #{net_forward.1} parent=0 // loop_exit
    _

</llo_original>
